<compile_context>
chip_gen: v5e
topology: v5e:2x2
jax: 0.10.0
libtpu: 0.0.40
codegen_flags: <defaults>
</compile_context>

<pallas_src>
import functools

import jax
import jax.numpy as jnp
from jax import lax
from jax.experimental import pallas as pl
from jax.experimental.pallas import tpu as pltpu


def make_moment_matrix(h, w, dtype=jnp.float32):
    """Host-built (HW, 8) moment matrix G.

    Column 0 = 1, column 1 = x coords (varying along W, the fast axis),
    column 2 = y coords (varying along H, the slow axis), columns 3..7 = 0.
    `p @ G` then yields [sum p, sum p*x, sum p*y, 0, ...] in one MXU matmul.
    Requires H > 1 and W > 1 (same as torch make_coordinate_grid)."""
    x = 2.0 * (jnp.arange(w, dtype=dtype) / (w - 1)) - 1.0
    y = 2.0 * (jnp.arange(h, dtype=dtype) / (h - 1)) - 1.0
    xx = jnp.tile(x[None, :], (h, 1)).reshape(h * w)   # x varies along W
    yy = jnp.tile(y[:, None], (1, w)).reshape(h * w)   # y varies along H
    ones = jnp.ones((h * w,), dtype)
    zeros = jnp.zeros((h * w, 5), dtype)
    return jnp.concatenate(
        [ones[:, None], xx[:, None], yy[:, None], zeros], axis=1)  # (HW, 8)


def _choose_block_b(batch, c, hw, *, budget_bytes=8 << 20, cap=8):
    """Batch elements per grid step: largest divisor of `batch` whose
    double-buffered, sublane/lane-padded f32 activation tile fits the budget.
    Capped at 8 to bound the statically-unrolled per-step live set."""
    c_pad = ((c + 7) // 8) * 8
    hw_pad = ((hw + 127) // 128) * 128
    per_elem = 2 * c_pad * hw_pad * 4          # double-buffered f32 x tile
    bt = max(1, min(batch, cap, budget_bytes // per_elem))
    while batch % bt:
        bt -= 1
    return bt


def _kp_kernel(x_ref, w_ref, b_ref, g_ref, out_ref, *, block_b):
    # x_ref:   (Bt, C, HW)  VMEM   predictor activations, HW on the lane axis
    # w_ref:   (K, C)       VMEM   1x1-conv weight, pre-scaled by 1/temperature
    # b_ref:   (K, 1)       VMEM   bias column, pre-scaled by 1/temperature
    # g_ref:   (HW, 8)      VMEM   moment matrix [1, x, y, 0, ...]
    # out_ref: (Bt, K, 2)   VMEM   keypoints, last dim = (x, y)
    w = w_ref[...]                                       # (K, C)
    b = b_ref[...]                                       # (K, 1)
    g = g_ref[...]                                       # (HW, 8)
    for i in range(block_b):
        x_b = x_ref[i]                                   # (C, HW), leading-axis slice
        # predictor head on the MXU; logits already divided by temperature
        logits = jnp.dot(w, x_b,
                         preferred_element_type=jnp.float32,
                         precision=lax.Precision.HIGHEST) + b     # (K, HW)
        # numerically-stable softmax fused with the keypoint-mean reduction:
        # kp = (sum p * g) / (sum p); normalization applied to the reduced sums.
        m = jnp.max(logits, axis=-1, keepdims=True)       # (K, 1)   XLU
        p = jnp.exp(logits - m)                           # (K, HW)  EUP
        mom = jnp.dot(p, g,
                      preferred_element_type=jnp.float32,
                      precision=lax.Precision.HIGHEST)    # (K, 8) = [denom, sx, sy, ...]
        inv = pl.reciprocal(mom[:, 0:1], approx=False)    # (K, 1)
        out_ref[i] = mom[:, 1:3] * inv                    # (K, 2) = (kp_x, kp_y)


def kp_detector_forward(x_nchw, weight, bias, *, temperature=0.1):
    """x_nchw: (B, C, H, W) float32.  weight: (C, K).  bias: (K,).
    Returns {'value': (B, num_kp, 2)} matching KPDetector(dimension=2)."""
    B, C, H, W = x_nchw.shape
    assert H > 1 and W > 1, "make_coordinate_grid requires H > 1 and W > 1"
    K = weight.shape[1]
    HW = H * W

    # NCHW -> lane-dense (B, C, HW) (pure reshape, row-major over H, W).
    x = x_nchw.reshape(B, C, HW).astype(jnp.float32)
    g = make_moment_matrix(H, W)                          # (HW, 8)

    # Fold 1/temperature into the tiny parameter tensors (host-side, free).
    inv_t = jnp.float32(1.0) / jnp.float32(temperature)
    w_kc = jnp.transpose(weight.astype(jnp.float32)) * inv_t        # (K, C)
    b_k1 = (bias.astype(jnp.float32) * inv_t)[:, None]              # (K, 1)

    Bt = _choose_block_b(B, C, HW)

    # VMEM budget derived from the real (padded) block sizes, with headroom.
    c_pad = ((C + 7) // 8) * 8
    hw_pad = ((HW + 127) // 128) * 128
    x_block_bytes = Bt * c_pad * hw_pad * 4
    g_bytes = hw_pad * 128 * 4                 # 8 lanes pad to 128 in VMEM
    work_bytes = 4 * 16 * hw_pad * 4           # logits / p working tiles (rough)
    est = 2 * x_block_bytes + 2 * g_bytes + work_bytes + (4 << 20)
    vmem_limit = int(min(64 << 20, max(32 << 20, est)))

    kernel = functools.partial(_kp_kernel, block_b=Bt)

    out_bk2 = pl.pallas_call(
        kernel,
        out_shape=jax.ShapeDtypeStruct((B, K, 2), jnp.float32),
        grid_spec=pltpu.PrefetchScalarGridSpec(
            num_scalar_prefetch=0,
            grid=(B // Bt,),
            in_specs=[
                pl.BlockSpec((Bt, C, HW), lambda i: (i, 0, 0)),   # x
                pl.BlockSpec((K, C), lambda i: (0, 0)),           # weight (VMEM, MXU)
                pl.BlockSpec((K, 1), lambda i: (0, 0)),           # bias column
                pl.BlockSpec((HW, 8), lambda i: (0, 0)),          # moment matrix G
            ],
            out_specs=pl.BlockSpec((Bt, K, 2), lambda i: (i, 0, 0)),
        ),
        compiler_params=pltpu.CompilerParams(
            dimension_semantics=("parallel",),
            vmem_limit_bytes=vmem_limit,
        ),
    )(x, w_kc, b_k1, g)

    return {"value": out_bk2}


def _reference_forward(x_nchw, weight, bias, *, temperature=0.1):
    """Plain-JAX reference following the torch code path (dimension=2)."""
    B, C, H, W = x_nchw.shape
    K = weight.shape[1]
    heat = jnp.einsum("bchw,ck->bkhw", x_nchw, weight,
                      precision=lax.Precision.HIGHEST) + bias[None, :, None, None]
    flat = heat.reshape(B, K, H * W)
    flat = jax.nn.softmax(flat / temperature, axis=2)
    heat = flat.reshape(B, K, H, W)
    x = 2.0 * (jnp.arange(W, dtype=jnp.float32) / (W - 1)) - 1.0
    y = 2.0 * (jnp.arange(H, dtype=jnp.float32) / (H - 1)) - 1.0
    xx = jnp.tile(x[None, :], (H, 1))
    yy = jnp.tile(y[:, None], (1, W))
    grid = jnp.stack([xx, yy], axis=-1)[None, None]         # (1, 1, H, W, 2)
    value = jnp.sum(heat[..., None] * grid, axis=(2, 3))    # (B, K, 2)
    return {"value": value}


if __name__ == "__main__":
    # Module defaults: num_channels=3, num_kp=10, temperature=0.1, dimension=2
    B, C, H, W = 2, 3, 16, 16
    num_kp = 10
    temperature = 0.1

    key = jax.random.PRNGKey(0)
    kx, kw, kb = jax.random.split(key, 3)
    x = jax.random.normal(kx, (B, C, H, W), dtype=jnp.float32)
    # deterministic synthetic predictor-head parameters
    weight = 0.5 * jax.random.normal(kw, (C, num_kp), dtype=jnp.float32)
    bias = 0.1 * jax.random.normal(kb, (num_kp,), dtype=jnp.float32)

    out = kp_detector_forward(x, weight, bias, temperature=temperature)
    jax.block_until_ready(out["value"])

    ref = _reference_forward(x, weight, bias, temperature=temperature)
    assert out["value"].shape == (B, num_kp, 2)
    assert jnp.allclose(out["value"], ref["value"], atol=5e-5, rtol=1e-5), (
        "mismatch vs reference"
    )
    print("KERNEL_OK")
</pallas_src>

<mosaic_0001>
module attributes {stable_mosaic.version = 11 : i64} {
  func.func @_kp_kernel(%arg0: i32, %arg1: memref<2x3x256xf32, #tpu.memory_space<vmem>>, %arg2: memref<10x3xf32, #tpu.memory_space<vmem>>, %arg3: memref<10x1xf32, #tpu.memory_space<vmem>>, %arg4: memref<256x8xf32, #tpu.memory_space<vmem>>, %arg5: memref<2x10x2xf32, #tpu.memory_space<vmem>>) attributes {dimension_semantics = [#tpu.dimension_semantics<parallel>], iteration_bounds = array<i64: 1>, scalar_prefetch = 0 : i64, scratch_operands = 0 : i64, tpu.core_type = #tpu.core_type<tc>, window_params = [{transform_indices = @transform_0, window_bounds = array<i64: 2, 3, 256>}, {pipeline_mode = #tpu.pipeline_mode<synchronous>, transform_indices = @transform_1, window_bounds = array<i64: 10, 3>}, {pipeline_mode = #tpu.pipeline_mode<synchronous>, transform_indices = @transform_2, window_bounds = array<i64: 10, 1>}, {pipeline_mode = #tpu.pipeline_mode<synchronous>, transform_indices = @transform_3, window_bounds = array<i64: 256, 8>}, {transform_indices = @transform_4, window_bounds = array<i64: 2, 10, 2>}]} {
    %c0 = arith.constant 0 : index
    %c0_0 = arith.constant 0 : index
    %0 = vector.load %arg2[%c0, %c0_0] : memref<10x3xf32, #tpu.memory_space<vmem>>, vector<10x3xf32>
    %c0_1 = arith.constant 0 : index
    %c0_2 = arith.constant 0 : index
    %1 = vector.load %arg3[%c0_1, %c0_2] : memref<10x1xf32, #tpu.memory_space<vmem>>, vector<10x1xf32>
    %c0_3 = arith.constant 0 : index
    %c0_4 = arith.constant 0 : index
    %2 = vector.load %arg4[%c0_3, %c0_4] : memref<256x8xf32, #tpu.memory_space<vmem>>, vector<256x8xf32>
    %c0_5 = arith.constant 0 : index
    %c0_6 = arith.constant 0 : index
    %c0_7 = arith.constant 0 : index
    %3 = vector.load %arg1[%c0_5, %c0_6, %c0_7] : memref<2x3x256xf32, #tpu.memory_space<vmem>>, vector<1x3x256xf32>
    %4 = vector.shape_cast %3 : vector<1x3x256xf32> to vector<3x256xf32>
    %cst = arith.constant dense<0.000000e+00> : vector<10x256xf32>
    %5 = tpu.matmul %0, %4, %cst {dimension_numbers = #tpu.dot_dimension_numbers<[1], [0], [0], [1], [0, 0, 1, 1], [], []>, precision = #tpu.contract_precision<fp32>} : vector<10x3xf32>, vector<3x256xf32>, vector<10x256xf32> -> vector<10x256xf32>
    %6 = vector.broadcast %1 : vector<10x1xf32> to vector<10x256xf32>
    %7 = arith.addf %5, %6 : vector<10x256xf32>
    %cst_8 = arith.constant dense<0xFF800000> : vector<10xf32>
    %8 = vector.multi_reduction <maximumf>, %7, %cst_8 [1] : vector<10x256xf32> to vector<10xf32>
    %9 = vector.shape_cast %8 : vector<10xf32> to vector<10x1xf32>
    %10 = vector.broadcast %9 : vector<10x1xf32> to vector<10x256xf32>
    %11 = arith.subf %7, %10 : vector<10x256xf32>
    %12 = math.exp %11 : vector<10x256xf32>
    %cst_9 = arith.constant dense<0.000000e+00> : vector<10x8xf32>
    %13 = tpu.matmul %12, %2, %cst_9 {dimension_numbers = #tpu.dot_dimension_numbers<[1], [0], [0], [1], [0, 0, 1, 1], [], []>, precision = #tpu.contract_precision<fp32>} : vector<10x256xf32>, vector<256x8xf32>, vector<10x8xf32> -> vector<10x8xf32>
    %14 = vector.extract_strided_slice %13 {offsets = [0, 0], sizes = [10, 1], strides = [1, 1]} : vector<10x8xf32> to vector<10x1xf32>
    %15 = tpu.reciprocal %14 : vector<10x1xf32> -> vector<10x1xf32>
    %16 = vector.extract_strided_slice %13 {offsets = [0, 1], sizes = [10, 2], strides = [1, 1]} : vector<10x8xf32> to vector<10x2xf32>
    %17 = vector.broadcast %15 : vector<10x1xf32> to vector<10x2xf32>
    %18 = arith.mulf %16, %17 : vector<10x2xf32>
    %c0_10 = arith.constant 0 : index
    %c0_11 = arith.constant 0 : index
    %c0_12 = arith.constant 0 : index
    %19 = vector.load %arg5[%c0_10, %c0_11, %c0_12] : memref<2x10x2xf32, #tpu.memory_space<vmem>>, vector<1x10x2xf32>
    %20 = vector.shape_cast %19 : vector<1x10x2xf32> to vector<10x2xf32>
    %21 = vector.shape_cast %18 : vector<10x2xf32> to vector<1x10x2xf32>
    tpu.vector_store %arg5[%c0_10, %c0_11, %c0_12], %21 {strides = array<i32>} : memref<2x10x2xf32, #tpu.memory_space<vmem>>, vector<1x10x2xf32>,
    %c1 = arith.constant 1 : index
    %c0_13 = arith.constant 0 : index
    %c0_14 = arith.constant 0 : index
    %22 = vector.load %arg1[%c1, %c0_13, %c0_14] : memref<2x3x256xf32, #tpu.memory_space<vmem>>, vector<1x3x256xf32>
    %23 = vector.shape_cast %22 : vector<1x3x256xf32> to vector<3x256xf32>
    %cst_15 = arith.constant dense<0.000000e+00> : vector<10x256xf32>
    %24 = tpu.matmul %0, %23, %cst_15 {dimension_numbers = #tpu.dot_dimension_numbers<[1], [0], [0], [1], [0, 0, 1, 1], [], []>, precision = #tpu.contract_precision<fp32>} : vector<10x3xf32>, vector<3x256xf32>, vector<10x256xf32> -> vector<10x256xf32>
    %25 = vector.broadcast %1 : vector<10x1xf32> to vector<10x256xf32>
    %26 = arith.addf %24, %25 : vector<10x256xf32>
    %cst_16 = arith.constant dense<0xFF800000> : vector<10xf32>
    %27 = vector.multi_reduction <maximumf>, %26, %cst_16 [1] : vector<10x256xf32> to vector<10xf32>
    %28 = vector.shape_cast %27 : vector<10xf32> to vector<10x1xf32>
    %29 = vector.broadcast %28 : vector<10x1xf32> to vector<10x256xf32>
    %30 = arith.subf %26, %29 : vector<10x256xf32>
    %31 = math.exp %30 : vector<10x256xf32>
    %cst_17 = arith.constant dense<0.000000e+00> : vector<10x8xf32>
    %32 = tpu.matmul %31, %2, %cst_17 {dimension_numbers = #tpu.dot_dimension_numbers<[1], [0], [0], [1], [0, 0, 1, 1], [], []>, precision = #tpu.contract_precision<fp32>} : vector<10x256xf32>, vector<256x8xf32>, vector<10x8xf32> -> vector<10x8xf32>
    %33 = vector.extract_strided_slice %32 {offsets = [0, 0], sizes = [10, 1], strides = [1, 1]} : vector<10x8xf32> to vector<10x1xf32>
    %34 = tpu.reciprocal %33 : vector<10x1xf32> -> vector<10x1xf32>
    %35 = vector.extract_strided_slice %32 {offsets = [0, 1], sizes = [10, 2], strides = [1, 1]} : vector<10x8xf32> to vector<10x2xf32>
    %36 = vector.broadcast %34 : vector<10x1xf32> to vector<10x2xf32>
    %37 = arith.mulf %35, %36 : vector<10x2xf32>
    %c1_18 = arith.constant 1 : index
    %c0_19 = arith.constant 0 : index
    %c0_20 = arith.constant 0 : index
    %38 = vector.load %arg5[%c1_18, %c0_19, %c0_20] : memref<2x10x2xf32, #tpu.memory_space<vmem>>, vector<1x10x2xf32>
    %39 = vector.shape_cast %38 : vector<1x10x2xf32> to vector<10x2xf32>
    %40 = vector.shape_cast %37 : vector<10x2xf32> to vector<1x10x2xf32>
    tpu.vector_store %arg5[%c1_18, %c0_19, %c0_20], %40 {strides = array<i32>} : memref<2x10x2xf32, #tpu.memory_space<vmem>>, vector<1x10x2xf32>,
    return
  }
  func.func @transform_0(%arg0: i32) -> (i32, i32, i32) {
    %c0_i32 = arith.constant 0 : i32
    %c0_i32_0 = arith.constant 0 : i32
    %c0_i32_1 = arith.constant 0 : i32
    return %arg0, %c0_i32, %c0_i32_0 : i32, i32, i32
  }
  func.func @transform_1(%arg0: i32) -> (i32, i32) {
    %c0_i32 = arith.constant 0 : i32
    %c0_i32_0 = arith.constant 0 : i32
    %c0_i32_1 = arith.constant 0 : i32
    return %c0_i32, %c0_i32_0 : i32, i32
  }
  func.func @transform_2(%arg0: i32) -> (i32, i32) {
    %c0_i32 = arith.constant 0 : i32
    %c0_i32_0 = arith.constant 0 : i32
    %c0_i32_1 = arith.constant 0 : i32
    return %c0_i32, %c0_i32_0 : i32, i32
  }
  func.func @transform_3(%arg0: i32) -> (i32, i32) {
    %c0_i32 = arith.constant 0 : i32
    %c0_i32_0 = arith.constant 0 : i32
    %c0_i32_1 = arith.constant 0 : i32
    return %c0_i32, %c0_i32_0 : i32, i32
  }
  func.func @transform_4(%arg0: i32) -> (i32, i32, i32) {
    %c0_i32 = arith.constant 0 : i32
    %c0_i32_0 = arith.constant 0 : i32
    %c0_i32_1 = arith.constant 0 : i32
    return %arg0, %c0_i32, %c0_i32_0 : i32, i32, i32
  }
}

</mosaic_0001>

<llo_original>
// kernel: tpu_custom_call.1
$region0: #{tpu_custom_call.1}
  #allocation0 [shape = 'u32[]', space=smem, size = 0x4, offset = 0x4, fixed_abs, tag = 'smem constant byte address 0x4 - core index']
  #allocation1 [shape = 'u32[72,128]{1,0:T(1,128)}', space=vmem, size = 0x9000, scoped, tag = 'internal scratch']
  %s0 = inlined_call_operand.vmem [shape: f32[2,3,256], index: 0, kind: input, shape index: {}]
  %s1 = inlined_call_operand.vmem [shape: f32[10,3], index: 1, kind: input, shape index: {}]
  %s2 = inlined_call_operand.vmem [shape: f32[10,1], index: 2, kind: input, shape index: {}]
  %s3 = inlined_call_operand.vmem [shape: f32[256,8], index: 3, kind: input, shape index: {}]
  %s4 = inlined_call_operand.vmem [shape: f32[2,10,2], index: 4, kind: output, shape index: {}]
  %s5 = sld [smem:[#allocation0]]
  $region26: #{tpu_custom_call.1} parent=0
    _
  %s7 = ssub.s32 1, %s5
  %s8 = scalar_select 0, %s7, %s5
  // Predicated region
  $region2: #{tpu_custom_call.1} parent=0 // pred_check
    _
  $region3: #{tpu_custom_call.1} parent=0 // pred_check_branch
    %10 = sbr.rel (0) target = $region5
  $region4: #{tpu_custom_call.1} parent=0 // pred_region
    _
  $region5: #{tpu_custom_call.1} parent=0 // pred_fallthru
    _
  // Predicated region
  $region6: #{tpu_custom_call.1} parent=0 // pred_check
    _
  $region7: #{tpu_custom_call.1} parent=0 // pred_check_branch
    %12 = sbr.rel (0) target = $region9
  $region8: #{tpu_custom_call.1} parent=0 // pred_region
    _
  $region9: #{tpu_custom_call.1} parent=0 // pred_fallthru
    _
  // Predicated region
  $region10: #{tpu_custom_call.1} parent=0 // pred_check
    _
  $region11: #{tpu_custom_call.1} parent=0 // pred_check_branch
    %14 = sbr.rel (0) target = $region13
  $region12: #{tpu_custom_call.1} parent=0 // pred_region
    _
  $region13: #{tpu_custom_call.1} parent=0 // pred_fallthru
    _
  // Predicated region
  $region14: #{tpu_custom_call.1} parent=0 // pred_check
    _
  $region15: #{tpu_custom_call.1} parent=0 // pred_check_branch
    %16 = sbr.rel (0) target = $region17
  $region16: #{tpu_custom_call.1} parent=0 // pred_region
    _
  $region17: #{tpu_custom_call.1} parent=0 // pred_fallthru
    _
  %v17 = vld [vmem:[%s1] sm:$0xff]
  %v18 = vld [vmem:[%s1 + $0x8] sm:$0x3]
  %v19 = vld [vmem:[%s2] sm:$0xff]
  %v20 = vld [vmem:[%s2 + $0x8] sm:$0x3]
  %v21 = vld [vmem:[%s3] sm:$0xff]
  %v22 = vld [vmem:[%s3 + $0x8] sm:$0xff]
  %v23 = vld [vmem:[%s3 + $0x10] sm:$0xff]
  %v24 = vld [vmem:[%s3 + $0x18] sm:$0xff]
  %v25 = vld [vmem:[%s3 + $0x20] sm:$0xff]
  %v26 = vld [vmem:[%s3 + $0x28] sm:$0xff]
  %v27 = vld [vmem:[%s3 + $0x30] sm:$0xff]
  %v28 = vld [vmem:[%s3 + $0x38] sm:$0xff]
  %v29 = vld [vmem:[%s3 + $0x40] sm:$0xff]
  %v30 = vld [vmem:[%s3 + $0x48] sm:$0xff]
  %v31 = vld [vmem:[%s3 + $0x50] sm:$0xff]
  %v32 = vld [vmem:[%s3 + $0x58] sm:$0xff]
  %v33 = vld [vmem:[%s3 + $0x60] sm:$0xff]
  %v34 = vld [vmem:[%s3 + $0x68] sm:$0xff]
  %v35 = vld [vmem:[%s3 + $0x70] sm:$0xff]
  %v36 = vld [vmem:[%s3 + $0x78] sm:$0xff]
  %v37 = vld [vmem:[%s3 + $0x80] sm:$0xff]
  %v38 = vld [vmem:[%s3 + $0x88] sm:$0xff]
  %v39 = vld [vmem:[%s3 + $0x90] sm:$0xff]
  %v40 = vld [vmem:[%s3 + $0x98] sm:$0xff]
  %v41 = vld [vmem:[%s3 + $0xa0] sm:$0xff]
  %v42 = vld [vmem:[%s3 + $0xa8] sm:$0xff]
  %v43 = vld [vmem:[%s3 + $0xb0] sm:$0xff]
  %v44 = vld [vmem:[%s3 + $0xb8] sm:$0xff]
  %v45 = vld [vmem:[%s3 + $0xc0] sm:$0xff]
  %v46 = vld [vmem:[%s3 + $0xc8] sm:$0xff]
  %v47 = vld [vmem:[%s3 + $0xd0] sm:$0xff]
  %v48 = vld [vmem:[%s3 + $0xd8] sm:$0xff]
  %v49 = vld [vmem:[%s3 + $0xe0] sm:$0xff]
  %v50 = vld [vmem:[%s3 + $0xe8] sm:$0xff]
  %v51 = vld [vmem:[%s3 + $0xf0] sm:$0xff]
  %v52 = vld [vmem:[%s3 + $0xf8] sm:$0xff]
  %v53 = vld [vmem:[%s0] sm:$0x77]
  %55 = vset.pattern.permute.xlu0 0
  %56 = vperm.xlu0 %55, %v19
  %v57 = vpop.permute.xlu0 %56
  %60 = vset.pattern.permute.xlu0 0
  %61 = vperm.xlu0 %60, %v20
  %v62 = vpop.permute.xlu0 %61
  %65 = vst [vmem:[#allocation1] ss:$2 sm:$0xff] %v53
  %v66 = vld.sshfl [vmem:[#allocation1] sm:$0xff pattern:$0x75316420]
  %v67 = vld.sshfl [vmem:[#allocation1 + $0x8] sm:$0xff pattern:$0x75316420]
  %vm68 = vcmask 23552
  %v70 = vsel %vm68, %v17, 0
  %v73 = vsel %vm68, %v18, 0
  %vm75 = vcmask 1042432
  %v76 = vsel %vm75, %v66, 0
  %v78 = vsel %vm75, %v67, 0
  %80 = vmatpush.msra.mxu0 0.0
  %81 = vmatpush.msra.mxu0 0.0
  %82 = vmatpush.msra.mxu0 0.0
  %83 = vmatpush.msra.mxu0 0.0
  %84 = vmatpush.msra.mxu0 0.0
  %85 = vmatpush.msra.mxu0 0.0
  %86 = vmatpush.msra.mxu0 0.0
  %87 = vmatpush.msra.mxu0 0.0
  %88 = vmatpush.msra.mxu0 0.0
  %89 = vmatpush.msra.mxu0 0.0
  %90 = vmatpush.msra.mxu0 0.0
  %91 = vmatpush.msra.mxu0 0.0
  %92 = vmatpush.msra.mxu0 0.0
  %93 = vmatpush.msra.mxu0 0.0
  %94 = vmatpush.msra.mxu0 0.0
  %v95 = vand.u32 %v76, 4294901760
  %96 = vmatpush.msra.mxu0 %v95
  %v97 = vand.u32 %v70, 4294901760
  %v98 = vsub.f32 %v70, %v97
  %v99 = vand.u32 %v98, 4294901760
  %v100 = vsub.f32 %v98, %v99
  %v101 = vand.u32 %v100, 4294901760
  %102 = vmatmul.f32.gmra.mxu0 %v101
  %v103 = vpop.f32.mrf.mxu0
  %v104 = vadd.f32 %v57, %v103
  %v105 = vand.u32 %v73, 4294901760
  %v106 = vsub.f32 %v73, %v105
  %v107 = vand.u32 %v106, 4294901760
  %v108 = vsub.f32 %v106, %v107
  %v109 = vand.u32 %v108, 4294901760
  %110 = vmatmul.f32.gmra.mxu0 %v109
  %v111 = vpop.f32.mrf.mxu0
  %v112 = vadd.f32 %v62, %v111
  %113 = vdwg.mxu0
  %114 = vmatpush.msra.mxu0 0.0
  %115 = vmatpush.msra.mxu0 0.0
  %116 = vmatpush.msra.mxu0 0.0
  %117 = vmatpush.msra.mxu0 0.0
  %118 = vmatpush.msra.mxu0 0.0
  %119 = vmatpush.msra.mxu0 0.0
  %120 = vmatpush.msra.mxu0 0.0
  %121 = vmatpush.msra.mxu0 0.0
  %122 = vmatpush.msra.mxu0 0.0
  %123 = vmatpush.msra.mxu0 0.0
  %124 = vmatpush.msra.mxu0 0.0
  %125 = vmatpush.msra.mxu0 0.0
  %126 = vmatpush.msra.mxu0 0.0
  %127 = vmatpush.msra.mxu0 0.0
  %128 = vmatpush.msra.mxu0 0.0
  %v129 = vand.u32 %v76, 4294901760
  %v130 = vsub.f32 %v76, %v129
  %v131 = vand.u32 %v130, 4294901760
  %v132 = vsub.f32 %v130, %v131
  %v133 = vand.u32 %v132, 4294901760
  %134 = vmatpush.msra.mxu0 %v133
  %v135 = vand.u32 %v70, 4294901760
  %136 = vmatmul.f32.gmra.mxu0 %v135
  %v137 = vpop.f32.mrf.mxu0
  %v138 = vadd.f32 %v104, %v137
  %v139 = vand.u32 %v73, 4294901760
  %140 = vmatmul.f32.gmra.mxu0 %v139
  %v141 = vpop.f32.mrf.mxu0
  %v142 = vadd.f32 %v112, %v141
  %143 = vdwg.mxu0
  %144 = vmatpush.msra.mxu0 0.0
  %145 = vmatpush.msra.mxu0 0.0
  %146 = vmatpush.msra.mxu0 0.0
  %147 = vmatpush.msra.mxu0 0.0
  %148 = vmatpush.msra.mxu0 0.0
  %149 = vmatpush.msra.mxu0 0.0
  %150 = vmatpush.msra.mxu0 0.0
  %151 = vmatpush.msra.mxu0 0.0
  %152 = vmatpush.msra.mxu0 0.0
  %153 = vmatpush.msra.mxu0 0.0
  %154 = vmatpush.msra.mxu0 0.0
  %155 = vmatpush.msra.mxu0 0.0
  %156 = vmatpush.msra.mxu0 0.0
  %157 = vmatpush.msra.mxu0 0.0
  %158 = vmatpush.msra.mxu0 0.0
  %v159 = vand.u32 %v76, 4294901760
  %v160 = vsub.f32 %v76, %v159
  %161 = vmatpush.msra.mxu0 %v160
  %v162 = vand.u32 %v70, 4294901760
  %v163 = vsub.f32 %v70, %v162
  %164 = vmatmul.f32.gmra.mxu0 %v163
  %v165 = vpop.f32.mrf.mxu0
  %v166 = vadd.f32 %v138, %v165
  %v167 = vand.u32 %v73, 4294901760
  %v168 = vsub.f32 %v73, %v167
  %169 = vmatmul.f32.gmra.mxu0 %v168
  %v170 = vpop.f32.mrf.mxu0
  %v171 = vadd.f32 %v142, %v170
  %172 = vdwg.mxu0
  %173 = vmatpush.msra.mxu0 0.0
  %174 = vmatpush.msra.mxu0 0.0
  %175 = vmatpush.msra.mxu0 0.0
  %176 = vmatpush.msra.mxu0 0.0
  %177 = vmatpush.msra.mxu0 0.0
  %178 = vmatpush.msra.mxu0 0.0
  %179 = vmatpush.msra.mxu0 0.0
  %180 = vmatpush.msra.mxu0 0.0
  %181 = vmatpush.msra.mxu0 0.0
  %182 = vmatpush.msra.mxu0 0.0
  %183 = vmatpush.msra.mxu0 0.0
  %184 = vmatpush.msra.mxu0 0.0
  %185 = vmatpush.msra.mxu0 0.0
  %186 = vmatpush.msra.mxu0 0.0
  %187 = vmatpush.msra.mxu0 0.0
  %v188 = vand.u32 %v76, 4294901760
  %189 = vmatpush.msra.mxu0 %v188
  %v190 = vand.u32 %v70, 4294901760
  %v191 = vsub.f32 %v70, %v190
  %v192 = vand.u32 %v191, 4294901760
  %193 = vmatmul.f32.gmra.mxu0 %v192
  %v194 = vpop.f32.mrf.mxu0
  %v195 = vadd.f32 %v166, %v194
  %v196 = vand.u32 %v73, 4294901760
  %v197 = vsub.f32 %v73, %v196
  %v198 = vand.u32 %v197, 4294901760
  %199 = vmatmul.f32.gmra.mxu0 %v198
  %v200 = vpop.f32.mrf.mxu0
  %v201 = vadd.f32 %v171, %v200
  %202 = vdwg.mxu0
  %203 = vmatpush.msra.mxu0 0.0
  %204 = vmatpush.msra.mxu0 0.0
  %205 = vmatpush.msra.mxu0 0.0
  %206 = vmatpush.msra.mxu0 0.0
  %207 = vmatpush.msra.mxu0 0.0
  %208 = vmatpush.msra.mxu0 0.0
  %209 = vmatpush.msra.mxu0 0.0
  %210 = vmatpush.msra.mxu0 0.0
  %211 = vmatpush.msra.mxu0 0.0
  %212 = vmatpush.msra.mxu0 0.0
  %213 = vmatpush.msra.mxu0 0.0
  %214 = vmatpush.msra.mxu0 0.0
  %215 = vmatpush.msra.mxu0 0.0
  %216 = vmatpush.msra.mxu0 0.0
  %217 = vmatpush.msra.mxu0 0.0
  %v218 = vand.u32 %v76, 4294901760
  %v219 = vsub.f32 %v76, %v218
  %v220 = vand.u32 %v219, 4294901760
  %221 = vmatpush.msra.mxu0 %v220
  %v222 = vand.u32 %v70, 4294901760
  %223 = vmatmul.f32.gmra.mxu0 %v222
  %v224 = vpop.f32.mrf.mxu0
  %v225 = vadd.f32 %v195, %v224
  %v226 = vand.u32 %v73, 4294901760
  %227 = vmatmul.f32.gmra.mxu0 %v226
  %v228 = vpop.f32.mrf.mxu0
  %v229 = vadd.f32 %v201, %v228
  %230 = vdwg.mxu0
  %231 = vmatpush.msra.mxu0 0.0
  %232 = vmatpush.msra.mxu0 0.0
  %233 = vmatpush.msra.mxu0 0.0
  %234 = vmatpush.msra.mxu0 0.0
  %235 = vmatpush.msra.mxu0 0.0
  %236 = vmatpush.msra.mxu0 0.0
  %237 = vmatpush.msra.mxu0 0.0
  %238 = vmatpush.msra.mxu0 0.0
  %239 = vmatpush.msra.mxu0 0.0
  %240 = vmatpush.msra.mxu0 0.0
  %241 = vmatpush.msra.mxu0 0.0
  %242 = vmatpush.msra.mxu0 0.0
  %243 = vmatpush.msra.mxu0 0.0
  %244 = vmatpush.msra.mxu0 0.0
  %245 = vmatpush.msra.mxu0 0.0
  %v246 = vand.u32 %v76, 4294901760
  %247 = vmatpush.msra.mxu0 %v246
  %v248 = vand.u32 %v70, 4294901760
  %249 = vmatmul.f32.gmra.mxu0 %v248
  %v250 = vpop.f32.mrf.mxu0
  %v251 = vadd.f32 %v225, %v250
  %v252 = vand.u32 %v73, 4294901760
  %253 = vmatmul.f32.gmra.mxu0 %v252
  %v254 = vpop.f32.mrf.mxu0
  %v255 = vadd.f32 %v229, %v254
  %256 = vdwg.mxu0
  %257 = vmatpush.msra.mxu0 0.0
  %258 = vmatpush.msra.mxu0 0.0
  %259 = vmatpush.msra.mxu0 0.0
  %260 = vmatpush.msra.mxu0 0.0
  %261 = vmatpush.msra.mxu0 0.0
  %262 = vmatpush.msra.mxu0 0.0
  %263 = vmatpush.msra.mxu0 0.0
  %264 = vmatpush.msra.mxu0 0.0
  %265 = vmatpush.msra.mxu0 0.0
  %266 = vmatpush.msra.mxu0 0.0
  %267 = vmatpush.msra.mxu0 0.0
  %268 = vmatpush.msra.mxu0 0.0
  %269 = vmatpush.msra.mxu0 0.0
  %270 = vmatpush.msra.mxu0 0.0
  %271 = vmatpush.msra.mxu0 0.0
  %v272 = vand.u32 %v78, 4294901760
  %273 = vmatpush.msra.mxu0 %v272
  %v274 = vand.u32 %v70, 4294901760
  %v275 = vsub.f32 %v70, %v274
  %v276 = vand.u32 %v275, 4294901760
  %v277 = vsub.f32 %v275, %v276
  %v278 = vand.u32 %v277, 4294901760
  %279 = vmatmul.f32.gmra.mxu0 %v278
  %v280 = vpop.f32.mrf.mxu0
  %v281 = vadd.f32 %v57, %v280
  %v282 = vand.u32 %v73, 4294901760
  %v283 = vsub.f32 %v73, %v282
  %v284 = vand.u32 %v283, 4294901760
  %v285 = vsub.f32 %v283, %v284
  %v286 = vand.u32 %v285, 4294901760
  %287 = vmatmul.f32.gmra.mxu0 %v286
  %v288 = vpop.f32.mrf.mxu0
  %v289 = vadd.f32 %v62, %v288
  %290 = vdwg.mxu0
  %291 = vmatpush.msra.mxu0 0.0
  %292 = vmatpush.msra.mxu0 0.0
  %293 = vmatpush.msra.mxu0 0.0
  %294 = vmatpush.msra.mxu0 0.0
  %295 = vmatpush.msra.mxu0 0.0
  %296 = vmatpush.msra.mxu0 0.0
  %297 = vmatpush.msra.mxu0 0.0
  %298 = vmatpush.msra.mxu0 0.0
  %299 = vmatpush.msra.mxu0 0.0
  %300 = vmatpush.msra.mxu0 0.0
  %301 = vmatpush.msra.mxu0 0.0
  %302 = vmatpush.msra.mxu0 0.0
  %303 = vmatpush.msra.mxu0 0.0
  %304 = vmatpush.msra.mxu0 0.0
  %305 = vmatpush.msra.mxu0 0.0
  %v306 = vand.u32 %v78, 4294901760
  %v307 = vsub.f32 %v78, %v306
  %v308 = vand.u32 %v307, 4294901760
  %v309 = vsub.f32 %v307, %v308
  %v310 = vand.u32 %v309, 4294901760
  %311 = vmatpush.msra.mxu0 %v310
  %v312 = vand.u32 %v70, 4294901760
  %313 = vmatmul.f32.gmra.mxu0 %v312
  %v314 = vpop.f32.mrf.mxu0
  %v315 = vadd.f32 %v281, %v314
  %v316 = vand.u32 %v73, 4294901760
  %317 = vmatmul.f32.gmra.mxu0 %v316
  %v318 = vpop.f32.mrf.mxu0
  %v319 = vadd.f32 %v289, %v318
  %320 = vdwg.mxu0
  %321 = vmatpush.msra.mxu0 0.0
  %322 = vmatpush.msra.mxu0 0.0
  %323 = vmatpush.msra.mxu0 0.0
  %324 = vmatpush.msra.mxu0 0.0
  %325 = vmatpush.msra.mxu0 0.0
  %326 = vmatpush.msra.mxu0 0.0
  %327 = vmatpush.msra.mxu0 0.0
  %328 = vmatpush.msra.mxu0 0.0
  %329 = vmatpush.msra.mxu0 0.0
  %330 = vmatpush.msra.mxu0 0.0
  %331 = vmatpush.msra.mxu0 0.0
  %332 = vmatpush.msra.mxu0 0.0
  %333 = vmatpush.msra.mxu0 0.0
  %334 = vmatpush.msra.mxu0 0.0
  %335 = vmatpush.msra.mxu0 0.0
  %v336 = vand.u32 %v78, 4294901760
  %v337 = vsub.f32 %v78, %v336
  %338 = vmatpush.msra.mxu0 %v337
  %v339 = vand.u32 %v70, 4294901760
  %v340 = vsub.f32 %v70, %v339
  %341 = vmatmul.f32.gmra.mxu0 %v340
  %v342 = vpop.f32.mrf.mxu0
  %v343 = vadd.f32 %v315, %v342
  %v344 = vand.u32 %v73, 4294901760
  %v345 = vsub.f32 %v73, %v344
  %346 = vmatmul.f32.gmra.mxu0 %v345
  %v347 = vpop.f32.mrf.mxu0
  %v348 = vadd.f32 %v319, %v347
  %349 = vdwg.mxu0
  %350 = vmatpush.msra.mxu0 0.0
  %351 = vmatpush.msra.mxu0 0.0
  %352 = vmatpush.msra.mxu0 0.0
  %353 = vmatpush.msra.mxu0 0.0
  %354 = vmatpush.msra.mxu0 0.0
  %355 = vmatpush.msra.mxu0 0.0
  %356 = vmatpush.msra.mxu0 0.0
  %357 = vmatpush.msra.mxu0 0.0
  %358 = vmatpush.msra.mxu0 0.0
  %359 = vmatpush.msra.mxu0 0.0
  %360 = vmatpush.msra.mxu0 0.0
  %361 = vmatpush.msra.mxu0 0.0
  %362 = vmatpush.msra.mxu0 0.0
  %363 = vmatpush.msra.mxu0 0.0
  %364 = vmatpush.msra.mxu0 0.0
  %v365 = vand.u32 %v78, 4294901760
  %366 = vmatpush.msra.mxu0 %v365
  %v367 = vand.u32 %v70, 4294901760
  %v368 = vsub.f32 %v70, %v367
  %v369 = vand.u32 %v368, 4294901760
  %370 = vmatmul.f32.gmra.mxu0 %v369
  %v371 = vpop.f32.mrf.mxu0
  %v372 = vadd.f32 %v343, %v371
  %v373 = vand.u32 %v73, 4294901760
  %v374 = vsub.f32 %v73, %v373
  %v375 = vand.u32 %v374, 4294901760
  %376 = vmatmul.f32.gmra.mxu0 %v375
  %v377 = vpop.f32.mrf.mxu0
  %v378 = vadd.f32 %v348, %v377
  %379 = vdwg.mxu0
  %380 = vmatpush.msra.mxu0 0.0
  %381 = vmatpush.msra.mxu0 0.0
  %382 = vmatpush.msra.mxu0 0.0
  %383 = vmatpush.msra.mxu0 0.0
  %384 = vmatpush.msra.mxu0 0.0
  %385 = vmatpush.msra.mxu0 0.0
  %386 = vmatpush.msra.mxu0 0.0
  %387 = vmatpush.msra.mxu0 0.0
  %388 = vmatpush.msra.mxu0 0.0
  %389 = vmatpush.msra.mxu0 0.0
  %390 = vmatpush.msra.mxu0 0.0
  %391 = vmatpush.msra.mxu0 0.0
  %392 = vmatpush.msra.mxu0 0.0
  %393 = vmatpush.msra.mxu0 0.0
  %394 = vmatpush.msra.mxu0 0.0
  %v395 = vand.u32 %v78, 4294901760
  %v396 = vsub.f32 %v78, %v395
  %v397 = vand.u32 %v396, 4294901760
  %398 = vmatpush.msra.mxu0 %v397
  %v399 = vand.u32 %v70, 4294901760
  %400 = vmatmul.f32.gmra.mxu0 %v399
  %v401 = vpop.f32.mrf.mxu0
  %v402 = vadd.f32 %v372, %v401
  %v403 = vand.u32 %v73, 4294901760
  %404 = vmatmul.f32.gmra.mxu0 %v403
  %v405 = vpop.f32.mrf.mxu0
  %v406 = vadd.f32 %v378, %v405
  %407 = vdwg.mxu0
  %408 = vmatpush.msra.mxu0 0.0
  %409 = vmatpush.msra.mxu0 0.0
  %410 = vmatpush.msra.mxu0 0.0
  %411 = vmatpush.msra.mxu0 0.0
  %412 = vmatpush.msra.mxu0 0.0
  %413 = vmatpush.msra.mxu0 0.0
  %414 = vmatpush.msra.mxu0 0.0
  %415 = vmatpush.msra.mxu0 0.0
  %416 = vmatpush.msra.mxu0 0.0
  %417 = vmatpush.msra.mxu0 0.0
  %418 = vmatpush.msra.mxu0 0.0
  %419 = vmatpush.msra.mxu0 0.0
  %420 = vmatpush.msra.mxu0 0.0
  %421 = vmatpush.msra.mxu0 0.0
  %422 = vmatpush.msra.mxu0 0.0
  %v423 = vand.u32 %v78, 4294901760
  %424 = vmatpush.msra.mxu0 %v423
  %v425 = vand.u32 %v70, 4294901760
  %426 = vmatmul.f32.gmra.mxu0 %v425
  %v427 = vpop.f32.mrf.mxu0
  %v428 = vadd.f32 %v402, %v427
  %v429 = vand.u32 %v73, 4294901760
  %430 = vmatmul.f32.gmra.mxu0 %v429
  %v431 = vpop.f32.mrf.mxu0
  %v432 = vadd.f32 %v406, %v431
  %433 = vdwg.mxu0
  %v434 = vmax.f32 %v251, %v428
  %435 = vmax.xlane.f32.xlu0 %v434
  %v436 = vpop.xlane.xlu0 %435
  %vm437 = vcmask 1041408
  %v438 = vsel %vm437, %v255, -inf
  %v439 = vsel %vm437, %v432, -inf
  %v440 = vmax.f32 %v438, %v439
  %441 = vmax.xlane.f32.xlu0 %v440
  %v442 = vpop.xlane.xlu0 %441
  %v443 = vsub.f32 %v251, %v436
  %v444 = vsub.f32 %v428, %v436
  %v445 = vsub.f32 %v255, %v442
  %v446 = vsub.f32 %v432, %v442
  %v447 = vmul.f32 %v443, 1.442695
  %v448 = vpow.pop %v447
  %v449 = vmul.f32 %v444, 1.442695
  %v450 = vpow.pop %v449
  %v451 = vmul.f32 %v445, 1.442695
  %v452 = vpow.pop %v451
  %v453 = vmul.f32 %v446, 1.442695
  %v454 = vpow.pop %v453
  %v455 = vand.u32 %v36, 4294901760
  %456 = vmatpush.msra.mxu0 %v455
  %v457 = vand.u32 %v35, 4294901760
  %458 = vmatpush.msra.mxu0 %v457
  %v459 = vand.u32 %v34, 4294901760
  %460 = vmatpush.msra.mxu0 %v459
  %v461 = vand.u32 %v33, 4294901760
  %462 = vmatpush.msra.mxu0 %v461
  %v463 = vand.u32 %v32, 4294901760
  %464 = vmatpush.msra.mxu0 %v463
  %v465 = vand.u32 %v31, 4294901760
  %466 = vmatpush.msra.mxu0 %v465
  %v467 = vand.u32 %v30, 4294901760
  %468 = vmatpush.msra.mxu0 %v467
  %v469 = vand.u32 %v29, 4294901760
  %470 = vmatpush.msra.mxu0 %v469
  %v471 = vand.u32 %v28, 4294901760
  %472 = vmatpush.msra.mxu0 %v471
  %v473 = vand.u32 %v27, 4294901760
  %474 = vmatpush.msra.mxu0 %v473
  %v475 = vand.u32 %v26, 4294901760
  %476 = vmatpush.msra.mxu0 %v475
  %v477 = vand.u32 %v25, 4294901760
  %478 = vmatpush.msra.mxu0 %v477
  %v479 = vand.u32 %v24, 4294901760
  %480 = vmatpush.msra.mxu0 %v479
  %v481 = vand.u32 %v23, 4294901760
  %482 = vmatpush.msra.mxu0 %v481
  %v483 = vand.u32 %v22, 4294901760
  %484 = vmatpush.msra.mxu0 %v483
  %v485 = vand.u32 %v21, 4294901760
  %486 = vmatpush.msra.mxu0 %v485
  %v487 = vand.u32 %v448, 4294901760
  %v488 = vsub.f32 %v448, %v487
  %v489 = vand.u32 %v488, 4294901760
  %v490 = vsub.f32 %v488, %v489
  %v491 = vand.u32 %v490, 4294901760
  %492 = vmatmul.f32.gmra.mxu0 %v491
  %v493 = vpop.f32.mrf.mxu0
  %v494 = vadd.f32 0.0, %v493
  %v495 = vand.u32 %v452, 4294901760
  %v496 = vsub.f32 %v452, %v495
  %v497 = vand.u32 %v496, 4294901760
  %v498 = vsub.f32 %v496, %v497
  %v499 = vand.u32 %v498, 4294901760
  %500 = vmatmul.f32.gmra.mxu0 %v499
  %v501 = vpop.f32.mrf.mxu0
  %v502 = vadd.f32 0.0, %v501
  %503 = vdwg.mxu0
  %v504 = vand.u32 %v36, 4294901760
  %v505 = vsub.f32 %v36, %v504
  %v506 = vand.u32 %v505, 4294901760
  %v507 = vsub.f32 %v505, %v506
  %v508 = vand.u32 %v507, 4294901760
  %509 = vmatpush.msra.mxu0 %v508
  %v510 = vand.u32 %v35, 4294901760
  %v511 = vsub.f32 %v35, %v510
  %v512 = vand.u32 %v511, 4294901760
  %v513 = vsub.f32 %v511, %v512
  %v514 = vand.u32 %v513, 4294901760
  %515 = vmatpush.msra.mxu0 %v514
  %v516 = vand.u32 %v34, 4294901760
  %v517 = vsub.f32 %v34, %v516
  %v518 = vand.u32 %v517, 4294901760
  %v519 = vsub.f32 %v517, %v518
  %v520 = vand.u32 %v519, 4294901760
  %521 = vmatpush.msra.mxu0 %v520
  %v522 = vand.u32 %v33, 4294901760
  %v523 = vsub.f32 %v33, %v522
  %v524 = vand.u32 %v523, 4294901760
  %v525 = vsub.f32 %v523, %v524
  %v526 = vand.u32 %v525, 4294901760
  %527 = vmatpush.msra.mxu0 %v526
  %v528 = vand.u32 %v32, 4294901760
  %v529 = vsub.f32 %v32, %v528
  %v530 = vand.u32 %v529, 4294901760
  %v531 = vsub.f32 %v529, %v530
  %v532 = vand.u32 %v531, 4294901760
  %533 = vmatpush.msra.mxu0 %v532
  %v534 = vand.u32 %v31, 4294901760
  %v535 = vsub.f32 %v31, %v534
  %v536 = vand.u32 %v535, 4294901760
  %v537 = vsub.f32 %v535, %v536
  %v538 = vand.u32 %v537, 4294901760
  %539 = vmatpush.msra.mxu0 %v538
  %v540 = vand.u32 %v30, 4294901760
  %v541 = vsub.f32 %v30, %v540
  %v542 = vand.u32 %v541, 4294901760
  %v543 = vsub.f32 %v541, %v542
  %v544 = vand.u32 %v543, 4294901760
  %545 = vmatpush.msra.mxu0 %v544
  %v546 = vand.u32 %v29, 4294901760
  %v547 = vsub.f32 %v29, %v546
  %v548 = vand.u32 %v547, 4294901760
  %v549 = vsub.f32 %v547, %v548
  %v550 = vand.u32 %v549, 4294901760
  %551 = vmatpush.msra.mxu0 %v550
  %v552 = vand.u32 %v28, 4294901760
  %v553 = vsub.f32 %v28, %v552
  %v554 = vand.u32 %v553, 4294901760
  %v555 = vsub.f32 %v553, %v554
  %v556 = vand.u32 %v555, 4294901760
  %557 = vmatpush.msra.mxu0 %v556
  %v558 = vand.u32 %v27, 4294901760
  %v559 = vsub.f32 %v27, %v558
  %v560 = vand.u32 %v559, 4294901760
  %v561 = vsub.f32 %v559, %v560
  %v562 = vand.u32 %v561, 4294901760
  %563 = vmatpush.msra.mxu0 %v562
  %v564 = vand.u32 %v26, 4294901760
  %v565 = vsub.f32 %v26, %v564
  %v566 = vand.u32 %v565, 4294901760
  %v567 = vsub.f32 %v565, %v566
  %v568 = vand.u32 %v567, 4294901760
  %569 = vmatpush.msra.mxu0 %v568
  %v570 = vand.u32 %v25, 4294901760
  %v571 = vsub.f32 %v25, %v570
  %v572 = vand.u32 %v571, 4294901760
  %v573 = vsub.f32 %v571, %v572
  %v574 = vand.u32 %v573, 4294901760
  %575 = vmatpush.msra.mxu0 %v574
  %v576 = vand.u32 %v24, 4294901760
  %v577 = vsub.f32 %v24, %v576
  %v578 = vand.u32 %v577, 4294901760
  %v579 = vsub.f32 %v577, %v578
  %v580 = vand.u32 %v579, 4294901760
  %581 = vmatpush.msra.mxu0 %v580
  %v582 = vand.u32 %v23, 4294901760
  %v583 = vsub.f32 %v23, %v582
  %v584 = vand.u32 %v583, 4294901760
  %v585 = vsub.f32 %v583, %v584
  %v586 = vand.u32 %v585, 4294901760
  %587 = vmatpush.msra.mxu0 %v586
  %v588 = vand.u32 %v22, 4294901760
  %v589 = vsub.f32 %v22, %v588
  %v590 = vand.u32 %v589, 4294901760
  %v591 = vsub.f32 %v589, %v590
  %v592 = vand.u32 %v591, 4294901760
  %593 = vmatpush.msra.mxu0 %v592
  %v594 = vand.u32 %v21, 4294901760
  %v595 = vsub.f32 %v21, %v594
  %v596 = vand.u32 %v595, 4294901760
  %v597 = vsub.f32 %v595, %v596
  %v598 = vand.u32 %v597, 4294901760
  %599 = vmatpush.msra.mxu0 %v598
  %v600 = vand.u32 %v448, 4294901760
  %601 = vmatmul.f32.gmra.mxu0 %v600
  %v602 = vpop.f32.mrf.mxu0
  %v603 = vadd.f32 %v494, %v602
  %v604 = vand.u32 %v452, 4294901760
  %605 = vmatmul.f32.gmra.mxu0 %v604
  %v606 = vpop.f32.mrf.mxu0
  %v607 = vadd.f32 %v502, %v606
  %608 = vdwg.mxu0
  %v609 = vand.u32 %v36, 4294901760
  %v610 = vsub.f32 %v36, %v609
  %611 = vmatpush.msra.mxu0 %v610
  %v612 = vand.u32 %v35, 4294901760
  %v613 = vsub.f32 %v35, %v612
  %614 = vmatpush.msra.mxu0 %v613
  %v615 = vand.u32 %v34, 4294901760
  %v616 = vsub.f32 %v34, %v615
  %617 = vmatpush.msra.mxu0 %v616
  %v618 = vand.u32 %v33, 4294901760
  %v619 = vsub.f32 %v33, %v618
  %620 = vmatpush.msra.mxu0 %v619
  %v621 = vand.u32 %v32, 4294901760
  %v622 = vsub.f32 %v32, %v621
  %623 = vmatpush.msra.mxu0 %v622
  %v624 = vand.u32 %v31, 4294901760
  %v625 = vsub.f32 %v31, %v624
  %626 = vmatpush.msra.mxu0 %v625
  %v627 = vand.u32 %v30, 4294901760
  %v628 = vsub.f32 %v30, %v627
  %629 = vmatpush.msra.mxu0 %v628
  %v630 = vand.u32 %v29, 4294901760
  %v631 = vsub.f32 %v29, %v630
  %632 = vmatpush.msra.mxu0 %v631
  %v633 = vand.u32 %v28, 4294901760
  %v634 = vsub.f32 %v28, %v633
  %635 = vmatpush.msra.mxu0 %v634
  %v636 = vand.u32 %v27, 4294901760
  %v637 = vsub.f32 %v27, %v636
  %638 = vmatpush.msra.mxu0 %v637
  %v639 = vand.u32 %v26, 4294901760
  %v640 = vsub.f32 %v26, %v639
  %641 = vmatpush.msra.mxu0 %v640
  %v642 = vand.u32 %v25, 4294901760
  %v643 = vsub.f32 %v25, %v642
  %644 = vmatpush.msra.mxu0 %v643
  %v645 = vand.u32 %v24, 4294901760
  %v646 = vsub.f32 %v24, %v645
  %647 = vmatpush.msra.mxu0 %v646
  %v648 = vand.u32 %v23, 4294901760
  %v649 = vsub.f32 %v23, %v648
  %650 = vmatpush.msra.mxu0 %v649
  %v651 = vand.u32 %v22, 4294901760
  %v652 = vsub.f32 %v22, %v651
  %653 = vmatpush.msra.mxu0 %v652
  %v654 = vand.u32 %v21, 4294901760
  %v655 = vsub.f32 %v21, %v654
  %656 = vmatpush.msra.mxu0 %v655
  %v657 = vand.u32 %v448, 4294901760
  %v658 = vsub.f32 %v448, %v657
  %659 = vmatmul.f32.gmra.mxu0 %v658
  %v660 = vpop.f32.mrf.mxu0
  %v661 = vadd.f32 %v603, %v660
  %v662 = vand.u32 %v452, 4294901760
  %v663 = vsub.f32 %v452, %v662
  %664 = vmatmul.f32.gmra.mxu0 %v663
  %v665 = vpop.f32.mrf.mxu0
  %v666 = vadd.f32 %v607, %v665
  %667 = vdwg.mxu0
  %v668 = vand.u32 %v36, 4294901760
  %669 = vmatpush.msra.mxu0 %v668
  %v670 = vand.u32 %v35, 4294901760
  %671 = vmatpush.msra.mxu0 %v670
  %v672 = vand.u32 %v34, 4294901760
  %673 = vmatpush.msra.mxu0 %v672
  %v674 = vand.u32 %v33, 4294901760
  %675 = vmatpush.msra.mxu0 %v674
  %v676 = vand.u32 %v32, 4294901760
  %677 = vmatpush.msra.mxu0 %v676
  %v678 = vand.u32 %v31, 4294901760
  %679 = vmatpush.msra.mxu0 %v678
  %v680 = vand.u32 %v30, 4294901760
  %681 = vmatpush.msra.mxu0 %v680
  %v682 = vand.u32 %v29, 4294901760
  %683 = vmatpush.msra.mxu0 %v682
  %v684 = vand.u32 %v28, 4294901760
  %685 = vmatpush.msra.mxu0 %v684
  %v686 = vand.u32 %v27, 4294901760
  %687 = vmatpush.msra.mxu0 %v686
  %v688 = vand.u32 %v26, 4294901760
  %689 = vmatpush.msra.mxu0 %v688
  %v690 = vand.u32 %v25, 4294901760
  %691 = vmatpush.msra.mxu0 %v690
  %v692 = vand.u32 %v24, 4294901760
  %693 = vmatpush.msra.mxu0 %v692
  %v694 = vand.u32 %v23, 4294901760
  %695 = vmatpush.msra.mxu0 %v694
  %v696 = vand.u32 %v22, 4294901760
  %697 = vmatpush.msra.mxu0 %v696
  %v698 = vand.u32 %v21, 4294901760
  %699 = vmatpush.msra.mxu0 %v698
  %v700 = vand.u32 %v448, 4294901760
  %v701 = vsub.f32 %v448, %v700
  %v702 = vand.u32 %v701, 4294901760
  %703 = vmatmul.f32.gmra.mxu0 %v702
  %v704 = vpop.f32.mrf.mxu0
  %v705 = vadd.f32 %v661, %v704
  %v706 = vand.u32 %v452, 4294901760
  %v707 = vsub.f32 %v452, %v706
  %v708 = vand.u32 %v707, 4294901760
  %709 = vmatmul.f32.gmra.mxu0 %v708
  %v710 = vpop.f32.mrf.mxu0
  %v711 = vadd.f32 %v666, %v710
  %712 = vdwg.mxu0
  %v713 = vand.u32 %v36, 4294901760
  %v714 = vsub.f32 %v36, %v713
  %v715 = vand.u32 %v714, 4294901760
  %716 = vmatpush.msra.mxu0 %v715
  %v717 = vand.u32 %v35, 4294901760
  %v718 = vsub.f32 %v35, %v717
  %v719 = vand.u32 %v718, 4294901760
  %720 = vmatpush.msra.mxu0 %v719
  %v721 = vand.u32 %v34, 4294901760
  %v722 = vsub.f32 %v34, %v721
  %v723 = vand.u32 %v722, 4294901760
  %724 = vmatpush.msra.mxu0 %v723
  %v725 = vand.u32 %v33, 4294901760
  %v726 = vsub.f32 %v33, %v725
  %v727 = vand.u32 %v726, 4294901760
  %728 = vmatpush.msra.mxu0 %v727
  %v729 = vand.u32 %v32, 4294901760
  %v730 = vsub.f32 %v32, %v729
  %v731 = vand.u32 %v730, 4294901760
  %732 = vmatpush.msra.mxu0 %v731
  %v733 = vand.u32 %v31, 4294901760
  %v734 = vsub.f32 %v31, %v733
  %v735 = vand.u32 %v734, 4294901760
  %736 = vmatpush.msra.mxu0 %v735
  %v737 = vand.u32 %v30, 4294901760
  %v738 = vsub.f32 %v30, %v737
  %v739 = vand.u32 %v738, 4294901760
  %740 = vmatpush.msra.mxu0 %v739
  %v741 = vand.u32 %v29, 4294901760
  %v742 = vsub.f32 %v29, %v741
  %v743 = vand.u32 %v742, 4294901760
  %744 = vmatpush.msra.mxu0 %v743
  %v745 = vand.u32 %v28, 4294901760
  %v746 = vsub.f32 %v28, %v745
  %v747 = vand.u32 %v746, 4294901760
  %748 = vmatpush.msra.mxu0 %v747
  %v749 = vand.u32 %v27, 4294901760
  %v750 = vsub.f32 %v27, %v749
  %v751 = vand.u32 %v750, 4294901760
  %752 = vmatpush.msra.mxu0 %v751
  %v753 = vand.u32 %v26, 4294901760
  %v754 = vsub.f32 %v26, %v753
  %v755 = vand.u32 %v754, 4294901760
  %756 = vmatpush.msra.mxu0 %v755
  %v757 = vand.u32 %v25, 4294901760
  %v758 = vsub.f32 %v25, %v757
  %v759 = vand.u32 %v758, 4294901760
  %760 = vmatpush.msra.mxu0 %v759
  %v761 = vand.u32 %v24, 4294901760
  %v762 = vsub.f32 %v24, %v761
  %v763 = vand.u32 %v762, 4294901760
  %764 = vmatpush.msra.mxu0 %v763
  %v765 = vand.u32 %v23, 4294901760
  %v766 = vsub.f32 %v23, %v765
  %v767 = vand.u32 %v766, 4294901760
  %768 = vmatpush.msra.mxu0 %v767
  %v769 = vand.u32 %v22, 4294901760
  %v770 = vsub.f32 %v22, %v769
  %v771 = vand.u32 %v770, 4294901760
  %772 = vmatpush.msra.mxu0 %v771
  %v773 = vand.u32 %v21, 4294901760
  %v774 = vsub.f32 %v21, %v773
  %v775 = vand.u32 %v774, 4294901760
  %776 = vmatpush.msra.mxu0 %v775
  %v777 = vand.u32 %v448, 4294901760
  %778 = vmatmul.f32.gmra.mxu0 %v777
  %v779 = vpop.f32.mrf.mxu0
  %v780 = vadd.f32 %v705, %v779
  %v781 = vand.u32 %v452, 4294901760
  %782 = vmatmul.f32.gmra.mxu0 %v781
  %v783 = vpop.f32.mrf.mxu0
  %v784 = vadd.f32 %v711, %v783
  %785 = vdwg.mxu0
  %v786 = vand.u32 %v36, 4294901760
  %787 = vmatpush.msra.mxu0 %v786
  %v788 = vand.u32 %v35, 4294901760
  %789 = vmatpush.msra.mxu0 %v788
  %v790 = vand.u32 %v34, 4294901760
  %791 = vmatpush.msra.mxu0 %v790
  %v792 = vand.u32 %v33, 4294901760
  %793 = vmatpush.msra.mxu0 %v792
  %v794 = vand.u32 %v32, 4294901760
  %795 = vmatpush.msra.mxu0 %v794
  %v796 = vand.u32 %v31, 4294901760
  %797 = vmatpush.msra.mxu0 %v796
  %v798 = vand.u32 %v30, 4294901760
  %799 = vmatpush.msra.mxu0 %v798
  %v800 = vand.u32 %v29, 4294901760
  %801 = vmatpush.msra.mxu0 %v800
  %v802 = vand.u32 %v28, 4294901760
  %803 = vmatpush.msra.mxu0 %v802
  %v804 = vand.u32 %v27, 4294901760
  %805 = vmatpush.msra.mxu0 %v804
  %v806 = vand.u32 %v26, 4294901760
  %807 = vmatpush.msra.mxu0 %v806
  %v808 = vand.u32 %v25, 4294901760
  %809 = vmatpush.msra.mxu0 %v808
  %v810 = vand.u32 %v24, 4294901760
  %811 = vmatpush.msra.mxu0 %v810
  %v812 = vand.u32 %v23, 4294901760
  %813 = vmatpush.msra.mxu0 %v812
  %v814 = vand.u32 %v22, 4294901760
  %815 = vmatpush.msra.mxu0 %v814
  %v816 = vand.u32 %v21, 4294901760
  %817 = vmatpush.msra.mxu0 %v816
  %v818 = vand.u32 %v448, 4294901760
  %819 = vmatmul.f32.gmra.mxu0 %v818
  %v820 = vpop.f32.mrf.mxu0
  %v821 = vadd.f32 %v780, %v820
  %v822 = vand.u32 %v452, 4294901760
  %823 = vmatmul.f32.gmra.mxu0 %v822
  %v824 = vpop.f32.mrf.mxu0
  %v825 = vadd.f32 %v784, %v824
  %826 = vdwg.mxu0
  %v827 = vand.u32 %v52, 4294901760
  %828 = vmatpush.msra.mxu0 %v827
  %v829 = vand.u32 %v51, 4294901760
  %830 = vmatpush.msra.mxu0 %v829
  %v831 = vand.u32 %v50, 4294901760
  %832 = vmatpush.msra.mxu0 %v831
  %v833 = vand.u32 %v49, 4294901760
  %834 = vmatpush.msra.mxu0 %v833
  %v835 = vand.u32 %v48, 4294901760
  %836 = vmatpush.msra.mxu0 %v835
  %v837 = vand.u32 %v47, 4294901760
  %838 = vmatpush.msra.mxu0 %v837
  %v839 = vand.u32 %v46, 4294901760
  %840 = vmatpush.msra.mxu0 %v839
  %v841 = vand.u32 %v45, 4294901760
  %842 = vmatpush.msra.mxu0 %v841
  %v843 = vand.u32 %v44, 4294901760
  %844 = vmatpush.msra.mxu0 %v843
  %v845 = vand.u32 %v43, 4294901760
  %846 = vmatpush.msra.mxu0 %v845
  %v847 = vand.u32 %v42, 4294901760
  %848 = vmatpush.msra.mxu0 %v847
  %v849 = vand.u32 %v41, 4294901760
  %850 = vmatpush.msra.mxu0 %v849
  %v851 = vand.u32 %v40, 4294901760
  %852 = vmatpush.msra.mxu0 %v851
  %v853 = vand.u32 %v39, 4294901760
  %854 = vmatpush.msra.mxu0 %v853
  %v855 = vand.u32 %v38, 4294901760
  %856 = vmatpush.msra.mxu0 %v855
  %v857 = vand.u32 %v37, 4294901760
  %858 = vmatpush.msra.mxu0 %v857
  %v859 = vand.u32 %v450, 4294901760
  %v860 = vsub.f32 %v450, %v859
  %v861 = vand.u32 %v860, 4294901760
  %v862 = vsub.f32 %v860, %v861
  %v863 = vand.u32 %v862, 4294901760
  %864 = vmatmul.f32.gmra.mxu0 %v863
  %v865 = vpop.f32.mrf.mxu0
  %v866 = vadd.f32 %v821, %v865
  %v867 = vand.u32 %v454, 4294901760
  %v868 = vsub.f32 %v454, %v867
  %v869 = vand.u32 %v868, 4294901760
  %v870 = vsub.f32 %v868, %v869
  %v871 = vand.u32 %v870, 4294901760
  %872 = vmatmul.f32.gmra.mxu0 %v871
  %v873 = vpop.f32.mrf.mxu0
  %v874 = vadd.f32 %v825, %v873
  %875 = vdwg.mxu0
  %v876 = vand.u32 %v52, 4294901760
  %v877 = vsub.f32 %v52, %v876
  %v878 = vand.u32 %v877, 4294901760
  %v879 = vsub.f32 %v877, %v878
  %v880 = vand.u32 %v879, 4294901760
  %881 = vmatpush.msra.mxu0 %v880
  %v882 = vand.u32 %v51, 4294901760
  %v883 = vsub.f32 %v51, %v882
  %v884 = vand.u32 %v883, 4294901760
  %v885 = vsub.f32 %v883, %v884
  %v886 = vand.u32 %v885, 4294901760
  %887 = vmatpush.msra.mxu0 %v886
  %v888 = vand.u32 %v50, 4294901760
  %v889 = vsub.f32 %v50, %v888
  %v890 = vand.u32 %v889, 4294901760
  %v891 = vsub.f32 %v889, %v890
  %v892 = vand.u32 %v891, 4294901760
  %893 = vmatpush.msra.mxu0 %v892
  %v894 = vand.u32 %v49, 4294901760
  %v895 = vsub.f32 %v49, %v894
  %v896 = vand.u32 %v895, 4294901760
  %v897 = vsub.f32 %v895, %v896
  %v898 = vand.u32 %v897, 4294901760
  %899 = vmatpush.msra.mxu0 %v898
  %v900 = vand.u32 %v48, 4294901760
  %v901 = vsub.f32 %v48, %v900
  %v902 = vand.u32 %v901, 4294901760
  %v903 = vsub.f32 %v901, %v902
  %v904 = vand.u32 %v903, 4294901760
  %905 = vmatpush.msra.mxu0 %v904
  %v906 = vand.u32 %v47, 4294901760
  %v907 = vsub.f32 %v47, %v906
  %v908 = vand.u32 %v907, 4294901760
  %v909 = vsub.f32 %v907, %v908
  %v910 = vand.u32 %v909, 4294901760
  %911 = vmatpush.msra.mxu0 %v910
  %v912 = vand.u32 %v46, 4294901760
  %v913 = vsub.f32 %v46, %v912
  %v914 = vand.u32 %v913, 4294901760
  %v915 = vsub.f32 %v913, %v914
  %v916 = vand.u32 %v915, 4294901760
  %917 = vmatpush.msra.mxu0 %v916
  %v918 = vand.u32 %v45, 4294901760
  %v919 = vsub.f32 %v45, %v918
  %v920 = vand.u32 %v919, 4294901760
  %v921 = vsub.f32 %v919, %v920
  %v922 = vand.u32 %v921, 4294901760
  %923 = vmatpush.msra.mxu0 %v922
  %v924 = vand.u32 %v44, 4294901760
  %v925 = vsub.f32 %v44, %v924
  %v926 = vand.u32 %v925, 4294901760
  %v927 = vsub.f32 %v925, %v926
  %v928 = vand.u32 %v927, 4294901760
  %929 = vmatpush.msra.mxu0 %v928
  %v930 = vand.u32 %v43, 4294901760
  %v931 = vsub.f32 %v43, %v930
  %v932 = vand.u32 %v931, 4294901760
  %v933 = vsub.f32 %v931, %v932
  %v934 = vand.u32 %v933, 4294901760
  %935 = vmatpush.msra.mxu0 %v934
  %v936 = vand.u32 %v42, 4294901760
  %v937 = vsub.f32 %v42, %v936
  %v938 = vand.u32 %v937, 4294901760
  %v939 = vsub.f32 %v937, %v938
  %v940 = vand.u32 %v939, 4294901760
  %941 = vmatpush.msra.mxu0 %v940
  %v942 = vand.u32 %v41, 4294901760
  %v943 = vsub.f32 %v41, %v942
  %v944 = vand.u32 %v943, 4294901760
  %v945 = vsub.f32 %v943, %v944
  %v946 = vand.u32 %v945, 4294901760
  %947 = vmatpush.msra.mxu0 %v946
  %v948 = vand.u32 %v40, 4294901760
  %v949 = vsub.f32 %v40, %v948
  %v950 = vand.u32 %v949, 4294901760
  %v951 = vsub.f32 %v949, %v950
  %v952 = vand.u32 %v951, 4294901760
  %953 = vmatpush.msra.mxu0 %v952
  %v954 = vand.u32 %v39, 4294901760
  %v955 = vsub.f32 %v39, %v954
  %v956 = vand.u32 %v955, 4294901760
  %v957 = vsub.f32 %v955, %v956
  %v958 = vand.u32 %v957, 4294901760
  %959 = vmatpush.msra.mxu0 %v958
  %v960 = vand.u32 %v38, 4294901760
  %v961 = vsub.f32 %v38, %v960
  %v962 = vand.u32 %v961, 4294901760
  %v963 = vsub.f32 %v961, %v962
  %v964 = vand.u32 %v963, 4294901760
  %965 = vmatpush.msra.mxu0 %v964
  %v966 = vand.u32 %v37, 4294901760
  %v967 = vsub.f32 %v37, %v966
  %v968 = vand.u32 %v967, 4294901760
  %v969 = vsub.f32 %v967, %v968
  %v970 = vand.u32 %v969, 4294901760
  %971 = vmatpush.msra.mxu0 %v970
  %v972 = vand.u32 %v450, 4294901760
  %973 = vmatmul.f32.gmra.mxu0 %v972
  %v974 = vpop.f32.mrf.mxu0
  %v975 = vadd.f32 %v866, %v974
  %v976 = vand.u32 %v454, 4294901760
  %977 = vmatmul.f32.gmra.mxu0 %v976
  %v978 = vpop.f32.mrf.mxu0
  %v979 = vadd.f32 %v874, %v978
  %980 = vdwg.mxu0
  %v981 = vand.u32 %v52, 4294901760
  %v982 = vsub.f32 %v52, %v981
  %983 = vmatpush.msra.mxu0 %v982
  %v984 = vand.u32 %v51, 4294901760
  %v985 = vsub.f32 %v51, %v984
  %986 = vmatpush.msra.mxu0 %v985
  %v987 = vand.u32 %v50, 4294901760
  %v988 = vsub.f32 %v50, %v987
  %989 = vmatpush.msra.mxu0 %v988
  %v990 = vand.u32 %v49, 4294901760
  %v991 = vsub.f32 %v49, %v990
  %992 = vmatpush.msra.mxu0 %v991
  %v993 = vand.u32 %v48, 4294901760
  %v994 = vsub.f32 %v48, %v993
  %995 = vmatpush.msra.mxu0 %v994
  %v996 = vand.u32 %v47, 4294901760
  %v997 = vsub.f32 %v47, %v996
  %998 = vmatpush.msra.mxu0 %v997
  %v999 = vand.u32 %v46, 4294901760
  %v1000 = vsub.f32 %v46, %v999
  %1001 = vmatpush.msra.mxu0 %v1000
  %v1002 = vand.u32 %v45, 4294901760
  %v1003 = vsub.f32 %v45, %v1002
  %1004 = vmatpush.msra.mxu0 %v1003
  %v1005 = vand.u32 %v44, 4294901760
  %v1006 = vsub.f32 %v44, %v1005
  %1007 = vmatpush.msra.mxu0 %v1006
  %v1008 = vand.u32 %v43, 4294901760
  %v1009 = vsub.f32 %v43, %v1008
  %1010 = vmatpush.msra.mxu0 %v1009
  %v1011 = vand.u32 %v42, 4294901760
  %v1012 = vsub.f32 %v42, %v1011
  %1013 = vmatpush.msra.mxu0 %v1012
  %v1014 = vand.u32 %v41, 4294901760
  %v1015 = vsub.f32 %v41, %v1014
  %1016 = vmatpush.msra.mxu0 %v1015
  %v1017 = vand.u32 %v40, 4294901760
  %v1018 = vsub.f32 %v40, %v1017
  %1019 = vmatpush.msra.mxu0 %v1018
  %v1020 = vand.u32 %v39, 4294901760
  %v1021 = vsub.f32 %v39, %v1020
  %1022 = vmatpush.msra.mxu0 %v1021
  %v1023 = vand.u32 %v38, 4294901760
  %v1024 = vsub.f32 %v38, %v1023
  %1025 = vmatpush.msra.mxu0 %v1024
  %v1026 = vand.u32 %v37, 4294901760
  %v1027 = vsub.f32 %v37, %v1026
  %1028 = vmatpush.msra.mxu0 %v1027
  %v1029 = vand.u32 %v450, 4294901760
  %v1030 = vsub.f32 %v450, %v1029
  %1031 = vmatmul.f32.gmra.mxu0 %v1030
  %v1032 = vpop.f32.mrf.mxu0
  %v1033 = vadd.f32 %v975, %v1032
  %v1034 = vand.u32 %v454, 4294901760
  %v1035 = vsub.f32 %v454, %v1034
  %1036 = vmatmul.f32.gmra.mxu0 %v1035
  %v1037 = vpop.f32.mrf.mxu0
  %v1038 = vadd.f32 %v979, %v1037
  %1039 = vdwg.mxu0
  %v1040 = vand.u32 %v52, 4294901760
  %1041 = vmatpush.msra.mxu0 %v1040
  %v1042 = vand.u32 %v51, 4294901760
  %1043 = vmatpush.msra.mxu0 %v1042
  %v1044 = vand.u32 %v50, 4294901760
  %1045 = vmatpush.msra.mxu0 %v1044
  %v1046 = vand.u32 %v49, 4294901760
  %1047 = vmatpush.msra.mxu0 %v1046
  %v1048 = vand.u32 %v48, 4294901760
  %1049 = vmatpush.msra.mxu0 %v1048
  %v1050 = vand.u32 %v47, 4294901760
  %1051 = vmatpush.msra.mxu0 %v1050
  %v1052 = vand.u32 %v46, 4294901760
  %1053 = vmatpush.msra.mxu0 %v1052
  %v1054 = vand.u32 %v45, 4294901760
  %1055 = vmatpush.msra.mxu0 %v1054
  %v1056 = vand.u32 %v44, 4294901760
  %1057 = vmatpush.msra.mxu0 %v1056
  %v1058 = vand.u32 %v43, 4294901760
  %1059 = vmatpush.msra.mxu0 %v1058
  %v1060 = vand.u32 %v42, 4294901760
  %1061 = vmatpush.msra.mxu0 %v1060
  %v1062 = vand.u32 %v41, 4294901760
  %1063 = vmatpush.msra.mxu0 %v1062
  %v1064 = vand.u32 %v40, 4294901760
  %1065 = vmatpush.msra.mxu0 %v1064
  %v1066 = vand.u32 %v39, 4294901760
  %1067 = vmatpush.msra.mxu0 %v1066
  %v1068 = vand.u32 %v38, 4294901760
  %1069 = vmatpush.msra.mxu0 %v1068
  %v1070 = vand.u32 %v37, 4294901760
  %1071 = vmatpush.msra.mxu0 %v1070
  %v1072 = vand.u32 %v450, 4294901760
  %v1073 = vsub.f32 %v450, %v1072
  %v1074 = vand.u32 %v1073, 4294901760
  %1075 = vmatmul.f32.gmra.mxu0 %v1074
  %v1076 = vpop.f32.mrf.mxu0
  %v1077 = vadd.f32 %v1033, %v1076
  %v1078 = vand.u32 %v454, 4294901760
  %v1079 = vsub.f32 %v454, %v1078
  %v1080 = vand.u32 %v1079, 4294901760
  %1081 = vmatmul.f32.gmra.mxu0 %v1080
  %v1082 = vpop.f32.mrf.mxu0
  %v1083 = vadd.f32 %v1038, %v1082
  %1084 = vdwg.mxu0
  %v1085 = vand.u32 %v52, 4294901760
  %v1086 = vsub.f32 %v52, %v1085
  %v1087 = vand.u32 %v1086, 4294901760
  %1088 = vmatpush.msra.mxu0 %v1087
  %v1089 = vand.u32 %v51, 4294901760
  %v1090 = vsub.f32 %v51, %v1089
  %v1091 = vand.u32 %v1090, 4294901760
  %1092 = vmatpush.msra.mxu0 %v1091
  %v1093 = vand.u32 %v50, 4294901760
  %v1094 = vsub.f32 %v50, %v1093
  %v1095 = vand.u32 %v1094, 4294901760
  %1096 = vmatpush.msra.mxu0 %v1095
  %v1097 = vand.u32 %v49, 4294901760
  %v1098 = vsub.f32 %v49, %v1097
  %v1099 = vand.u32 %v1098, 4294901760
  %1100 = vmatpush.msra.mxu0 %v1099
  %v1101 = vand.u32 %v48, 4294901760
  %v1102 = vsub.f32 %v48, %v1101
  %v1103 = vand.u32 %v1102, 4294901760
  %1104 = vmatpush.msra.mxu0 %v1103
  %v1105 = vand.u32 %v47, 4294901760
  %v1106 = vsub.f32 %v47, %v1105
  %v1107 = vand.u32 %v1106, 4294901760
  %1108 = vmatpush.msra.mxu0 %v1107
  %v1109 = vand.u32 %v46, 4294901760
  %v1110 = vsub.f32 %v46, %v1109
  %v1111 = vand.u32 %v1110, 4294901760
  %1112 = vmatpush.msra.mxu0 %v1111
  %v1113 = vand.u32 %v45, 4294901760
  %v1114 = vsub.f32 %v45, %v1113
  %v1115 = vand.u32 %v1114, 4294901760
  %1116 = vmatpush.msra.mxu0 %v1115
  %v1117 = vand.u32 %v44, 4294901760
  %v1118 = vsub.f32 %v44, %v1117
  %v1119 = vand.u32 %v1118, 4294901760
  %1120 = vmatpush.msra.mxu0 %v1119
  %v1121 = vand.u32 %v43, 4294901760
  %v1122 = vsub.f32 %v43, %v1121
  %v1123 = vand.u32 %v1122, 4294901760
  %1124 = vmatpush.msra.mxu0 %v1123
  %v1125 = vand.u32 %v42, 4294901760
  %v1126 = vsub.f32 %v42, %v1125
  %v1127 = vand.u32 %v1126, 4294901760
  %1128 = vmatpush.msra.mxu0 %v1127
  %v1129 = vand.u32 %v41, 4294901760
  %v1130 = vsub.f32 %v41, %v1129
  %v1131 = vand.u32 %v1130, 4294901760
  %1132 = vmatpush.msra.mxu0 %v1131
  %v1133 = vand.u32 %v40, 4294901760
  %v1134 = vsub.f32 %v40, %v1133
  %v1135 = vand.u32 %v1134, 4294901760
  %1136 = vmatpush.msra.mxu0 %v1135
  %v1137 = vand.u32 %v39, 4294901760
  %v1138 = vsub.f32 %v39, %v1137
  %v1139 = vand.u32 %v1138, 4294901760
  %1140 = vmatpush.msra.mxu0 %v1139
  %v1141 = vand.u32 %v38, 4294901760
  %v1142 = vsub.f32 %v38, %v1141
  %v1143 = vand.u32 %v1142, 4294901760
  %1144 = vmatpush.msra.mxu0 %v1143
  %v1145 = vand.u32 %v37, 4294901760
  %v1146 = vsub.f32 %v37, %v1145
  %v1147 = vand.u32 %v1146, 4294901760
  %1148 = vmatpush.msra.mxu0 %v1147
  %v1149 = vand.u32 %v450, 4294901760
  %1150 = vmatmul.f32.gmra.mxu0 %v1149
  %v1151 = vpop.f32.mrf.mxu0
  %v1152 = vadd.f32 %v1077, %v1151
  %v1153 = vand.u32 %v454, 4294901760
  %1154 = vmatmul.f32.gmra.mxu0 %v1153
  %v1155 = vpop.f32.mrf.mxu0
  %v1156 = vadd.f32 %v1083, %v1155
  %1157 = vdwg.mxu0
  %v1158 = vand.u32 %v52, 4294901760
  %1159 = vmatpush.msra.mxu0 %v1158
  %v1160 = vand.u32 %v51, 4294901760
  %1161 = vmatpush.msra.mxu0 %v1160
  %v1162 = vand.u32 %v50, 4294901760
  %1163 = vmatpush.msra.mxu0 %v1162
  %v1164 = vand.u32 %v49, 4294901760
  %1165 = vmatpush.msra.mxu0 %v1164
  %v1166 = vand.u32 %v48, 4294901760
  %1167 = vmatpush.msra.mxu0 %v1166
  %v1168 = vand.u32 %v47, 4294901760
  %1169 = vmatpush.msra.mxu0 %v1168
  %v1170 = vand.u32 %v46, 4294901760
  %1171 = vmatpush.msra.mxu0 %v1170
  %v1172 = vand.u32 %v45, 4294901760
  %1173 = vmatpush.msra.mxu0 %v1172
  %v1174 = vand.u32 %v44, 4294901760
  %1175 = vmatpush.msra.mxu0 %v1174
  %v1176 = vand.u32 %v43, 4294901760
  %1177 = vmatpush.msra.mxu0 %v1176
  %v1178 = vand.u32 %v42, 4294901760
  %1179 = vmatpush.msra.mxu0 %v1178
  %v1180 = vand.u32 %v41, 4294901760
  %1181 = vmatpush.msra.mxu0 %v1180
  %v1182 = vand.u32 %v40, 4294901760
  %1183 = vmatpush.msra.mxu0 %v1182
  %v1184 = vand.u32 %v39, 4294901760
  %1185 = vmatpush.msra.mxu0 %v1184
  %v1186 = vand.u32 %v38, 4294901760
  %1187 = vmatpush.msra.mxu0 %v1186
  %v1188 = vand.u32 %v37, 4294901760
  %1189 = vmatpush.msra.mxu0 %v1188
  %v1190 = vand.u32 %v450, 4294901760
  %1191 = vmatmul.f32.gmra.mxu0 %v1190
  %v1192 = vpop.f32.mrf.mxu0
  %v1193 = vadd.f32 %v1152, %v1192
  %v1194 = vand.u32 %v454, 4294901760
  %1195 = vmatmul.f32.gmra.mxu0 %v1194
  %v1196 = vpop.f32.mrf.mxu0
  %v1197 = vadd.f32 %v1156, %v1196
  %1198 = vdwg.mxu0
  %v1199 = vrcp.pop %v1193
  %v1200 = vmul.f32 %v1193, %v1199
  %v1201 = vsub.f32 1.0, %v1200
  %v1202 = vmul.f32 %v1199, %v1201
  %v1203 = vadd.f32 %v1199, %v1202
  %vm1204 = vweird.f32 %v1193
  %vm1205 = vweird.f32 %v1199
  %vm1206 = vmor %vm1204, %vm1205
  %v1207 = vsel %vm1206, %v1199, %v1203
  %v1208 = vand.u32 2147483647, %v1193
  %vm1209 = vcmp.eq.f32.partialorder %v1208, 8.507059e+37
  %v1210 = vand.u32 %v1193, 2147483648
  %v1211 = vor.u32 1.1754944e-38, %v1210
  %v1212 = vsel %vm1209, %v1211, %v1207
  %v1213 = vrcp.pop %v1197
  %v1214 = vmul.f32 %v1197, %v1213
  %v1215 = vsub.f32 1.0, %v1214
  %v1216 = vmul.f32 %v1213, %v1215
  %v1217 = vadd.f32 %v1213, %v1216
  %vm1218 = vweird.f32 %v1197
  %vm1219 = vweird.f32 %v1213
  %vm1220 = vmor %vm1218, %vm1219
  %v1221 = vsel %vm1220, %v1213, %v1217
  %v1222 = vand.u32 2147483647, %v1197
  %vm1223 = vcmp.eq.f32.partialorder %v1222, 8.507059e+37
  %v1224 = vand.u32 %v1197, 2147483648
  %v1225 = vor.u32 1.1754944e-38, %v1224
  %v1226 = vsel %vm1223, %v1225, %v1221
  %1228 = vset.pattern.permute.xlu0 0
  %1229 = vperm.xlu0 %1228, %v1212
  %v1230 = vpop.permute.xlu0 %1229
  %1233 = vset.pattern.permute.xlu0 0
  %1234 = vperm.xlu0 %1233, %v1226
  %v1235 = vpop.permute.xlu0 %1234
  %v1237 = vmul.f32 %v1193, %v1230
  %v1238 = vmul.f32 %v1197, %v1235
  %1241 = vrot.lane.b32.xlu0 %v1237, 127
  %v1242 = vpop.permute.xlu0 %1241
  %1243 = vrot.lane.b32.xlu0 %v1238, 127
  %v1244 = vpop.permute.xlu0 %1243
  %vm1247 = vcmask 15360
  %1248 = vst.msk [vmem:[%s4] sm:$0xff] %vm1247, %v1242
  %vm1249 = vcmask 9216
  %1250 = vst.msk [vmem:[%s4 + $0x8] sm:$0x3] %vm1249, %v1244
  %s1251 = scalar_lea.vmem %s0, 8
  %v1252 = vld [vmem:[%s1251] sm:$0x77]
  %1254 = vst [vmem:[#allocation1] ss:$2 sm:$0xff] %v1252
  %v1255 = vld.sshfl [vmem:[#allocation1] sm:$0xff pattern:$0x75316420]
  %v1256 = vld.sshfl [vmem:[#allocation1 + $0x8] sm:$0xff pattern:$0x75316420]
  %v1257 = vsel %vm75, %v1255, 0
  %v1259 = vsel %vm75, %v1256, 0
  %1261 = vmatpush.msra.mxu0 0.0
  %1262 = vmatpush.msra.mxu0 0.0
  %1263 = vmatpush.msra.mxu0 0.0
  %1264 = vmatpush.msra.mxu0 0.0
  %1265 = vmatpush.msra.mxu0 0.0
  %1266 = vmatpush.msra.mxu0 0.0
  %1267 = vmatpush.msra.mxu0 0.0
  %1268 = vmatpush.msra.mxu0 0.0
  %1269 = vmatpush.msra.mxu0 0.0
  %1270 = vmatpush.msra.mxu0 0.0
  %1271 = vmatpush.msra.mxu0 0.0
  %1272 = vmatpush.msra.mxu0 0.0
  %1273 = vmatpush.msra.mxu0 0.0
  %1274 = vmatpush.msra.mxu0 0.0
  %1275 = vmatpush.msra.mxu0 0.0
  %v1276 = vand.u32 %v1257, 4294901760
  %1277 = vmatpush.msra.mxu0 %v1276
  %v1278 = vand.u32 %v70, 4294901760
  %v1279 = vsub.f32 %v70, %v1278
  %v1280 = vand.u32 %v1279, 4294901760
  %v1281 = vsub.f32 %v1279, %v1280
  %v1282 = vand.u32 %v1281, 4294901760
  %1283 = vmatmul.f32.gmra.mxu0 %v1282
  %v1284 = vpop.f32.mrf.mxu0
  %v1285 = vadd.f32 %v57, %v1284
  %v1286 = vand.u32 %v73, 4294901760
  %v1287 = vsub.f32 %v73, %v1286
  %v1288 = vand.u32 %v1287, 4294901760
  %v1289 = vsub.f32 %v1287, %v1288
  %v1290 = vand.u32 %v1289, 4294901760
  %1291 = vmatmul.f32.gmra.mxu0 %v1290
  %v1292 = vpop.f32.mrf.mxu0
  %v1293 = vadd.f32 %v62, %v1292
  %1294 = vdwg.mxu0
  %1295 = vmatpush.msra.mxu0 0.0
  %1296 = vmatpush.msra.mxu0 0.0
  %1297 = vmatpush.msra.mxu0 0.0
  %1298 = vmatpush.msra.mxu0 0.0
  %1299 = vmatpush.msra.mxu0 0.0
  %1300 = vmatpush.msra.mxu0 0.0
  %1301 = vmatpush.msra.mxu0 0.0
  %1302 = vmatpush.msra.mxu0 0.0
  %1303 = vmatpush.msra.mxu0 0.0
  %1304 = vmatpush.msra.mxu0 0.0
  %1305 = vmatpush.msra.mxu0 0.0
  %1306 = vmatpush.msra.mxu0 0.0
  %1307 = vmatpush.msra.mxu0 0.0
  %1308 = vmatpush.msra.mxu0 0.0
  %1309 = vmatpush.msra.mxu0 0.0
  %v1310 = vand.u32 %v1257, 4294901760
  %v1311 = vsub.f32 %v1257, %v1310
  %v1312 = vand.u32 %v1311, 4294901760
  %v1313 = vsub.f32 %v1311, %v1312
  %v1314 = vand.u32 %v1313, 4294901760
  %1315 = vmatpush.msra.mxu0 %v1314
  %v1316 = vand.u32 %v70, 4294901760
  %1317 = vmatmul.f32.gmra.mxu0 %v1316
  %v1318 = vpop.f32.mrf.mxu0
  %v1319 = vadd.f32 %v1285, %v1318
  %v1320 = vand.u32 %v73, 4294901760
  %1321 = vmatmul.f32.gmra.mxu0 %v1320
  %v1322 = vpop.f32.mrf.mxu0
  %v1323 = vadd.f32 %v1293, %v1322
  %1324 = vdwg.mxu0
  %1325 = vmatpush.msra.mxu0 0.0
  %1326 = vmatpush.msra.mxu0 0.0
  %1327 = vmatpush.msra.mxu0 0.0
  %1328 = vmatpush.msra.mxu0 0.0
  %1329 = vmatpush.msra.mxu0 0.0
  %1330 = vmatpush.msra.mxu0 0.0
  %1331 = vmatpush.msra.mxu0 0.0
  %1332 = vmatpush.msra.mxu0 0.0
  %1333 = vmatpush.msra.mxu0 0.0
  %1334 = vmatpush.msra.mxu0 0.0
  %1335 = vmatpush.msra.mxu0 0.0
  %1336 = vmatpush.msra.mxu0 0.0
  %1337 = vmatpush.msra.mxu0 0.0
  %1338 = vmatpush.msra.mxu0 0.0
  %1339 = vmatpush.msra.mxu0 0.0
  %v1340 = vand.u32 %v1257, 4294901760
  %v1341 = vsub.f32 %v1257, %v1340
  %1342 = vmatpush.msra.mxu0 %v1341
  %v1343 = vand.u32 %v70, 4294901760
  %v1344 = vsub.f32 %v70, %v1343
  %1345 = vmatmul.f32.gmra.mxu0 %v1344
  %v1346 = vpop.f32.mrf.mxu0
  %v1347 = vadd.f32 %v1319, %v1346
  %v1348 = vand.u32 %v73, 4294901760
  %v1349 = vsub.f32 %v73, %v1348
  %1350 = vmatmul.f32.gmra.mxu0 %v1349
  %v1351 = vpop.f32.mrf.mxu0
  %v1352 = vadd.f32 %v1323, %v1351
  %1353 = vdwg.mxu0
  %1354 = vmatpush.msra.mxu0 0.0
  %1355 = vmatpush.msra.mxu0 0.0
  %1356 = vmatpush.msra.mxu0 0.0
  %1357 = vmatpush.msra.mxu0 0.0
  %1358 = vmatpush.msra.mxu0 0.0
  %1359 = vmatpush.msra.mxu0 0.0
  %1360 = vmatpush.msra.mxu0 0.0
  %1361 = vmatpush.msra.mxu0 0.0
  %1362 = vmatpush.msra.mxu0 0.0
  %1363 = vmatpush.msra.mxu0 0.0
  %1364 = vmatpush.msra.mxu0 0.0
  %1365 = vmatpush.msra.mxu0 0.0
  %1366 = vmatpush.msra.mxu0 0.0
  %1367 = vmatpush.msra.mxu0 0.0
  %1368 = vmatpush.msra.mxu0 0.0
  %v1369 = vand.u32 %v1257, 4294901760
  %1370 = vmatpush.msra.mxu0 %v1369
  %v1371 = vand.u32 %v70, 4294901760
  %v1372 = vsub.f32 %v70, %v1371
  %v1373 = vand.u32 %v1372, 4294901760
  %1374 = vmatmul.f32.gmra.mxu0 %v1373
  %v1375 = vpop.f32.mrf.mxu0
  %v1376 = vadd.f32 %v1347, %v1375
  %v1377 = vand.u32 %v73, 4294901760
  %v1378 = vsub.f32 %v73, %v1377
  %v1379 = vand.u32 %v1378, 4294901760
  %1380 = vmatmul.f32.gmra.mxu0 %v1379
  %v1381 = vpop.f32.mrf.mxu0
  %v1382 = vadd.f32 %v1352, %v1381
  %1383 = vdwg.mxu0
  %1384 = vmatpush.msra.mxu0 0.0
  %1385 = vmatpush.msra.mxu0 0.0
  %1386 = vmatpush.msra.mxu0 0.0
  %1387 = vmatpush.msra.mxu0 0.0
  %1388 = vmatpush.msra.mxu0 0.0
  %1389 = vmatpush.msra.mxu0 0.0
  %1390 = vmatpush.msra.mxu0 0.0
  %1391 = vmatpush.msra.mxu0 0.0
  %1392 = vmatpush.msra.mxu0 0.0
  %1393 = vmatpush.msra.mxu0 0.0
  %1394 = vmatpush.msra.mxu0 0.0
  %1395 = vmatpush.msra.mxu0 0.0
  %1396 = vmatpush.msra.mxu0 0.0
  %1397 = vmatpush.msra.mxu0 0.0
  %1398 = vmatpush.msra.mxu0 0.0
  %v1399 = vand.u32 %v1257, 4294901760
  %v1400 = vsub.f32 %v1257, %v1399
  %v1401 = vand.u32 %v1400, 4294901760
  %1402 = vmatpush.msra.mxu0 %v1401
  %v1403 = vand.u32 %v70, 4294901760
  %1404 = vmatmul.f32.gmra.mxu0 %v1403
  %v1405 = vpop.f32.mrf.mxu0
  %v1406 = vadd.f32 %v1376, %v1405
  %v1407 = vand.u32 %v73, 4294901760
  %1408 = vmatmul.f32.gmra.mxu0 %v1407
  %v1409 = vpop.f32.mrf.mxu0
  %v1410 = vadd.f32 %v1382, %v1409
  %1411 = vdwg.mxu0
  %1412 = vmatpush.msra.mxu0 0.0
  %1413 = vmatpush.msra.mxu0 0.0
  %1414 = vmatpush.msra.mxu0 0.0
  %1415 = vmatpush.msra.mxu0 0.0
  %1416 = vmatpush.msra.mxu0 0.0
  %1417 = vmatpush.msra.mxu0 0.0
  %1418 = vmatpush.msra.mxu0 0.0
  %1419 = vmatpush.msra.mxu0 0.0
  %1420 = vmatpush.msra.mxu0 0.0
  %1421 = vmatpush.msra.mxu0 0.0
  %1422 = vmatpush.msra.mxu0 0.0
  %1423 = vmatpush.msra.mxu0 0.0
  %1424 = vmatpush.msra.mxu0 0.0
  %1425 = vmatpush.msra.mxu0 0.0
  %1426 = vmatpush.msra.mxu0 0.0
  %v1427 = vand.u32 %v1257, 4294901760
  %1428 = vmatpush.msra.mxu0 %v1427
  %v1429 = vand.u32 %v70, 4294901760
  %1430 = vmatmul.f32.gmra.mxu0 %v1429
  %v1431 = vpop.f32.mrf.mxu0
  %v1432 = vadd.f32 %v1406, %v1431
  %v1433 = vand.u32 %v73, 4294901760
  %1434 = vmatmul.f32.gmra.mxu0 %v1433
  %v1435 = vpop.f32.mrf.mxu0
  %v1436 = vadd.f32 %v1410, %v1435
  %1437 = vdwg.mxu0
  %1438 = vmatpush.msra.mxu0 0.0
  %1439 = vmatpush.msra.mxu0 0.0
  %1440 = vmatpush.msra.mxu0 0.0
  %1441 = vmatpush.msra.mxu0 0.0
  %1442 = vmatpush.msra.mxu0 0.0
  %1443 = vmatpush.msra.mxu0 0.0
  %1444 = vmatpush.msra.mxu0 0.0
  %1445 = vmatpush.msra.mxu0 0.0
  %1446 = vmatpush.msra.mxu0 0.0
  %1447 = vmatpush.msra.mxu0 0.0
  %1448 = vmatpush.msra.mxu0 0.0
  %1449 = vmatpush.msra.mxu0 0.0
  %1450 = vmatpush.msra.mxu0 0.0
  %1451 = vmatpush.msra.mxu0 0.0
  %1452 = vmatpush.msra.mxu0 0.0
  %v1453 = vand.u32 %v1259, 4294901760
  %1454 = vmatpush.msra.mxu0 %v1453
  %v1455 = vand.u32 %v70, 4294901760
  %v1456 = vsub.f32 %v70, %v1455
  %v1457 = vand.u32 %v1456, 4294901760
  %v1458 = vsub.f32 %v1456, %v1457
  %v1459 = vand.u32 %v1458, 4294901760
  %1460 = vmatmul.f32.gmra.mxu0 %v1459
  %v1461 = vpop.f32.mrf.mxu0
  %v1462 = vadd.f32 %v57, %v1461
  %v1463 = vand.u32 %v73, 4294901760
  %v1464 = vsub.f32 %v73, %v1463
  %v1465 = vand.u32 %v1464, 4294901760
  %v1466 = vsub.f32 %v1464, %v1465
  %v1467 = vand.u32 %v1466, 4294901760
  %1468 = vmatmul.f32.gmra.mxu0 %v1467
  %v1469 = vpop.f32.mrf.mxu0
  %v1470 = vadd.f32 %v62, %v1469
  %1471 = vdwg.mxu0
  %1472 = vmatpush.msra.mxu0 0.0
  %1473 = vmatpush.msra.mxu0 0.0
  %1474 = vmatpush.msra.mxu0 0.0
  %1475 = vmatpush.msra.mxu0 0.0
  %1476 = vmatpush.msra.mxu0 0.0
  %1477 = vmatpush.msra.mxu0 0.0
  %1478 = vmatpush.msra.mxu0 0.0
  %1479 = vmatpush.msra.mxu0 0.0
  %1480 = vmatpush.msra.mxu0 0.0
  %1481 = vmatpush.msra.mxu0 0.0
  %1482 = vmatpush.msra.mxu0 0.0
  %1483 = vmatpush.msra.mxu0 0.0
  %1484 = vmatpush.msra.mxu0 0.0
  %1485 = vmatpush.msra.mxu0 0.0
  %1486 = vmatpush.msra.mxu0 0.0
  %v1487 = vand.u32 %v1259, 4294901760
  %v1488 = vsub.f32 %v1259, %v1487
  %v1489 = vand.u32 %v1488, 4294901760
  %v1490 = vsub.f32 %v1488, %v1489
  %v1491 = vand.u32 %v1490, 4294901760
  %1492 = vmatpush.msra.mxu0 %v1491
  %v1493 = vand.u32 %v70, 4294901760
  %1494 = vmatmul.f32.gmra.mxu0 %v1493
  %v1495 = vpop.f32.mrf.mxu0
  %v1496 = vadd.f32 %v1462, %v1495
  %v1497 = vand.u32 %v73, 4294901760
  %1498 = vmatmul.f32.gmra.mxu0 %v1497
  %v1499 = vpop.f32.mrf.mxu0
  %v1500 = vadd.f32 %v1470, %v1499
  %1501 = vdwg.mxu0
  %1502 = vmatpush.msra.mxu0 0.0
  %1503 = vmatpush.msra.mxu0 0.0
  %1504 = vmatpush.msra.mxu0 0.0
  %1505 = vmatpush.msra.mxu0 0.0
  %1506 = vmatpush.msra.mxu0 0.0
  %1507 = vmatpush.msra.mxu0 0.0
  %1508 = vmatpush.msra.mxu0 0.0
  %1509 = vmatpush.msra.mxu0 0.0
  %1510 = vmatpush.msra.mxu0 0.0
  %1511 = vmatpush.msra.mxu0 0.0
  %1512 = vmatpush.msra.mxu0 0.0
  %1513 = vmatpush.msra.mxu0 0.0
  %1514 = vmatpush.msra.mxu0 0.0
  %1515 = vmatpush.msra.mxu0 0.0
  %1516 = vmatpush.msra.mxu0 0.0
  %v1517 = vand.u32 %v1259, 4294901760
  %v1518 = vsub.f32 %v1259, %v1517
  %1519 = vmatpush.msra.mxu0 %v1518
  %v1520 = vand.u32 %v70, 4294901760
  %v1521 = vsub.f32 %v70, %v1520
  %1522 = vmatmul.f32.gmra.mxu0 %v1521
  %v1523 = vpop.f32.mrf.mxu0
  %v1524 = vadd.f32 %v1496, %v1523
  %v1525 = vand.u32 %v73, 4294901760
  %v1526 = vsub.f32 %v73, %v1525
  %1527 = vmatmul.f32.gmra.mxu0 %v1526
  %v1528 = vpop.f32.mrf.mxu0
  %v1529 = vadd.f32 %v1500, %v1528
  %1530 = vdwg.mxu0
  %1531 = vmatpush.msra.mxu0 0.0
  %1532 = vmatpush.msra.mxu0 0.0
  %1533 = vmatpush.msra.mxu0 0.0
  %1534 = vmatpush.msra.mxu0 0.0
  %1535 = vmatpush.msra.mxu0 0.0
  %1536 = vmatpush.msra.mxu0 0.0
  %1537 = vmatpush.msra.mxu0 0.0
  %1538 = vmatpush.msra.mxu0 0.0
  %1539 = vmatpush.msra.mxu0 0.0
  %1540 = vmatpush.msra.mxu0 0.0
  %1541 = vmatpush.msra.mxu0 0.0
  %1542 = vmatpush.msra.mxu0 0.0
  %1543 = vmatpush.msra.mxu0 0.0
  %1544 = vmatpush.msra.mxu0 0.0
  %1545 = vmatpush.msra.mxu0 0.0
  %v1546 = vand.u32 %v1259, 4294901760
  %1547 = vmatpush.msra.mxu0 %v1546
  %v1548 = vand.u32 %v70, 4294901760
  %v1549 = vsub.f32 %v70, %v1548
  %v1550 = vand.u32 %v1549, 4294901760
  %1551 = vmatmul.f32.gmra.mxu0 %v1550
  %v1552 = vpop.f32.mrf.mxu0
  %v1553 = vadd.f32 %v1524, %v1552
  %v1554 = vand.u32 %v73, 4294901760
  %v1555 = vsub.f32 %v73, %v1554
  %v1556 = vand.u32 %v1555, 4294901760
  %1557 = vmatmul.f32.gmra.mxu0 %v1556
  %v1558 = vpop.f32.mrf.mxu0
  %v1559 = vadd.f32 %v1529, %v1558
  %1560 = vdwg.mxu0
  %1561 = vmatpush.msra.mxu0 0.0
  %1562 = vmatpush.msra.mxu0 0.0
  %1563 = vmatpush.msra.mxu0 0.0
  %1564 = vmatpush.msra.mxu0 0.0
  %1565 = vmatpush.msra.mxu0 0.0
  %1566 = vmatpush.msra.mxu0 0.0
  %1567 = vmatpush.msra.mxu0 0.0
  %1568 = vmatpush.msra.mxu0 0.0
  %1569 = vmatpush.msra.mxu0 0.0
  %1570 = vmatpush.msra.mxu0 0.0
  %1571 = vmatpush.msra.mxu0 0.0
  %1572 = vmatpush.msra.mxu0 0.0
  %1573 = vmatpush.msra.mxu0 0.0
  %1574 = vmatpush.msra.mxu0 0.0
  %1575 = vmatpush.msra.mxu0 0.0
  %v1576 = vand.u32 %v1259, 4294901760
  %v1577 = vsub.f32 %v1259, %v1576
  %v1578 = vand.u32 %v1577, 4294901760
  %1579 = vmatpush.msra.mxu0 %v1578
  %v1580 = vand.u32 %v70, 4294901760
  %1581 = vmatmul.f32.gmra.mxu0 %v1580
  %v1582 = vpop.f32.mrf.mxu0
  %v1583 = vadd.f32 %v1553, %v1582
  %v1584 = vand.u32 %v73, 4294901760
  %1585 = vmatmul.f32.gmra.mxu0 %v1584
  %v1586 = vpop.f32.mrf.mxu0
  %v1587 = vadd.f32 %v1559, %v1586
  %1588 = vdwg.mxu0
  %1589 = vmatpush.msra.mxu0 0.0
  %1590 = vmatpush.msra.mxu0 0.0
  %1591 = vmatpush.msra.mxu0 0.0
  %1592 = vmatpush.msra.mxu0 0.0
  %1593 = vmatpush.msra.mxu0 0.0
  %1594 = vmatpush.msra.mxu0 0.0
  %1595 = vmatpush.msra.mxu0 0.0
  %1596 = vmatpush.msra.mxu0 0.0
  %1597 = vmatpush.msra.mxu0 0.0
  %1598 = vmatpush.msra.mxu0 0.0
  %1599 = vmatpush.msra.mxu0 0.0
  %1600 = vmatpush.msra.mxu0 0.0
  %1601 = vmatpush.msra.mxu0 0.0
  %1602 = vmatpush.msra.mxu0 0.0
  %1603 = vmatpush.msra.mxu0 0.0
  %v1604 = vand.u32 %v1259, 4294901760
  %1605 = vmatpush.msra.mxu0 %v1604
  %v1606 = vand.u32 %v70, 4294901760
  %1607 = vmatmul.f32.gmra.mxu0 %v1606
  %v1608 = vpop.f32.mrf.mxu0
  %v1609 = vadd.f32 %v1583, %v1608
  %v1610 = vand.u32 %v73, 4294901760
  %1611 = vmatmul.f32.gmra.mxu0 %v1610
  %v1612 = vpop.f32.mrf.mxu0
  %v1613 = vadd.f32 %v1587, %v1612
  %1614 = vdwg.mxu0
  %v1615 = vmax.f32 %v1432, %v1609
  %1616 = vmax.xlane.f32.xlu0 %v1615
  %v1617 = vpop.xlane.xlu0 %1616
  %v1618 = vsel %vm437, %v1436, -inf
  %v1619 = vsel %vm437, %v1613, -inf
  %v1620 = vmax.f32 %v1618, %v1619
  %1621 = vmax.xlane.f32.xlu0 %v1620
  %v1622 = vpop.xlane.xlu0 %1621
  %v1623 = vsub.f32 %v1432, %v1617
  %v1624 = vsub.f32 %v1609, %v1617
  %v1625 = vsub.f32 %v1436, %v1622
  %v1626 = vsub.f32 %v1613, %v1622
  %v1627 = vmul.f32 %v1623, 1.442695
  %v1628 = vpow.pop %v1627
  %v1629 = vmul.f32 %v1624, 1.442695
  %v1630 = vpow.pop %v1629
  %v1631 = vmul.f32 %v1625, 1.442695
  %v1632 = vpow.pop %v1631
  %v1633 = vmul.f32 %v1626, 1.442695
  %v1634 = vpow.pop %v1633
  %v1635 = vand.u32 %v36, 4294901760
  %1636 = vmatpush.msra.mxu0 %v1635
  %v1637 = vand.u32 %v35, 4294901760
  %1638 = vmatpush.msra.mxu0 %v1637
  %v1639 = vand.u32 %v34, 4294901760
  %1640 = vmatpush.msra.mxu0 %v1639
  %v1641 = vand.u32 %v33, 4294901760
  %1642 = vmatpush.msra.mxu0 %v1641
  %v1643 = vand.u32 %v32, 4294901760
  %1644 = vmatpush.msra.mxu0 %v1643
  %v1645 = vand.u32 %v31, 4294901760
  %1646 = vmatpush.msra.mxu0 %v1645
  %v1647 = vand.u32 %v30, 4294901760
  %1648 = vmatpush.msra.mxu0 %v1647
  %v1649 = vand.u32 %v29, 4294901760
  %1650 = vmatpush.msra.mxu0 %v1649
  %v1651 = vand.u32 %v28, 4294901760
  %1652 = vmatpush.msra.mxu0 %v1651
  %v1653 = vand.u32 %v27, 4294901760
  %1654 = vmatpush.msra.mxu0 %v1653
  %v1655 = vand.u32 %v26, 4294901760
  %1656 = vmatpush.msra.mxu0 %v1655
  %v1657 = vand.u32 %v25, 4294901760
  %1658 = vmatpush.msra.mxu0 %v1657
  %v1659 = vand.u32 %v24, 4294901760
  %1660 = vmatpush.msra.mxu0 %v1659
  %v1661 = vand.u32 %v23, 4294901760
  %1662 = vmatpush.msra.mxu0 %v1661
  %v1663 = vand.u32 %v22, 4294901760
  %1664 = vmatpush.msra.mxu0 %v1663
  %v1665 = vand.u32 %v21, 4294901760
  %1666 = vmatpush.msra.mxu0 %v1665
  %v1667 = vand.u32 %v1628, 4294901760
  %v1668 = vsub.f32 %v1628, %v1667
  %v1669 = vand.u32 %v1668, 4294901760
  %v1670 = vsub.f32 %v1668, %v1669
  %v1671 = vand.u32 %v1670, 4294901760
  %1672 = vmatmul.f32.gmra.mxu0 %v1671
  %v1673 = vpop.f32.mrf.mxu0
  %v1674 = vadd.f32 0.0, %v1673
  %v1675 = vand.u32 %v1632, 4294901760
  %v1676 = vsub.f32 %v1632, %v1675
  %v1677 = vand.u32 %v1676, 4294901760
  %v1678 = vsub.f32 %v1676, %v1677
  %v1679 = vand.u32 %v1678, 4294901760
  %1680 = vmatmul.f32.gmra.mxu0 %v1679
  %v1681 = vpop.f32.mrf.mxu0
  %v1682 = vadd.f32 0.0, %v1681
  %1683 = vdwg.mxu0
  %v1684 = vand.u32 %v36, 4294901760
  %v1685 = vsub.f32 %v36, %v1684
  %v1686 = vand.u32 %v1685, 4294901760
  %v1687 = vsub.f32 %v1685, %v1686
  %v1688 = vand.u32 %v1687, 4294901760
  %1689 = vmatpush.msra.mxu0 %v1688
  %v1690 = vand.u32 %v35, 4294901760
  %v1691 = vsub.f32 %v35, %v1690
  %v1692 = vand.u32 %v1691, 4294901760
  %v1693 = vsub.f32 %v1691, %v1692
  %v1694 = vand.u32 %v1693, 4294901760
  %1695 = vmatpush.msra.mxu0 %v1694
  %v1696 = vand.u32 %v34, 4294901760
  %v1697 = vsub.f32 %v34, %v1696
  %v1698 = vand.u32 %v1697, 4294901760
  %v1699 = vsub.f32 %v1697, %v1698
  %v1700 = vand.u32 %v1699, 4294901760
  %1701 = vmatpush.msra.mxu0 %v1700
  %v1702 = vand.u32 %v33, 4294901760
  %v1703 = vsub.f32 %v33, %v1702
  %v1704 = vand.u32 %v1703, 4294901760
  %v1705 = vsub.f32 %v1703, %v1704
  %v1706 = vand.u32 %v1705, 4294901760
  %1707 = vmatpush.msra.mxu0 %v1706
  %v1708 = vand.u32 %v32, 4294901760
  %v1709 = vsub.f32 %v32, %v1708
  %v1710 = vand.u32 %v1709, 4294901760
  %v1711 = vsub.f32 %v1709, %v1710
  %v1712 = vand.u32 %v1711, 4294901760
  %1713 = vmatpush.msra.mxu0 %v1712
  %v1714 = vand.u32 %v31, 4294901760
  %v1715 = vsub.f32 %v31, %v1714
  %v1716 = vand.u32 %v1715, 4294901760
  %v1717 = vsub.f32 %v1715, %v1716
  %v1718 = vand.u32 %v1717, 4294901760
  %1719 = vmatpush.msra.mxu0 %v1718
  %v1720 = vand.u32 %v30, 4294901760
  %v1721 = vsub.f32 %v30, %v1720
  %v1722 = vand.u32 %v1721, 4294901760
  %v1723 = vsub.f32 %v1721, %v1722
  %v1724 = vand.u32 %v1723, 4294901760
  %1725 = vmatpush.msra.mxu0 %v1724
  %v1726 = vand.u32 %v29, 4294901760
  %v1727 = vsub.f32 %v29, %v1726
  %v1728 = vand.u32 %v1727, 4294901760
  %v1729 = vsub.f32 %v1727, %v1728
  %v1730 = vand.u32 %v1729, 4294901760
  %1731 = vmatpush.msra.mxu0 %v1730
  %v1732 = vand.u32 %v28, 4294901760
  %v1733 = vsub.f32 %v28, %v1732
  %v1734 = vand.u32 %v1733, 4294901760
  %v1735 = vsub.f32 %v1733, %v1734
  %v1736 = vand.u32 %v1735, 4294901760
  %1737 = vmatpush.msra.mxu0 %v1736
  %v1738 = vand.u32 %v27, 4294901760
  %v1739 = vsub.f32 %v27, %v1738
  %v1740 = vand.u32 %v1739, 4294901760
  %v1741 = vsub.f32 %v1739, %v1740
  %v1742 = vand.u32 %v1741, 4294901760
  %1743 = vmatpush.msra.mxu0 %v1742
  %v1744 = vand.u32 %v26, 4294901760
  %v1745 = vsub.f32 %v26, %v1744
  %v1746 = vand.u32 %v1745, 4294901760
  %v1747 = vsub.f32 %v1745, %v1746
  %v1748 = vand.u32 %v1747, 4294901760
  %1749 = vmatpush.msra.mxu0 %v1748
  %v1750 = vand.u32 %v25, 4294901760
  %v1751 = vsub.f32 %v25, %v1750
  %v1752 = vand.u32 %v1751, 4294901760
  %v1753 = vsub.f32 %v1751, %v1752
  %v1754 = vand.u32 %v1753, 4294901760
  %1755 = vmatpush.msra.mxu0 %v1754
  %v1756 = vand.u32 %v24, 4294901760
  %v1757 = vsub.f32 %v24, %v1756
  %v1758 = vand.u32 %v1757, 4294901760
  %v1759 = vsub.f32 %v1757, %v1758
  %v1760 = vand.u32 %v1759, 4294901760
  %1761 = vmatpush.msra.mxu0 %v1760
  %v1762 = vand.u32 %v23, 4294901760
  %v1763 = vsub.f32 %v23, %v1762
  %v1764 = vand.u32 %v1763, 4294901760
  %v1765 = vsub.f32 %v1763, %v1764
  %v1766 = vand.u32 %v1765, 4294901760
  %1767 = vmatpush.msra.mxu0 %v1766
  %v1768 = vand.u32 %v22, 4294901760
  %v1769 = vsub.f32 %v22, %v1768
  %v1770 = vand.u32 %v1769, 4294901760
  %v1771 = vsub.f32 %v1769, %v1770
  %v1772 = vand.u32 %v1771, 4294901760
  %1773 = vmatpush.msra.mxu0 %v1772
  %v1774 = vand.u32 %v21, 4294901760
  %v1775 = vsub.f32 %v21, %v1774
  %v1776 = vand.u32 %v1775, 4294901760
  %v1777 = vsub.f32 %v1775, %v1776
  %v1778 = vand.u32 %v1777, 4294901760
  %1779 = vmatpush.msra.mxu0 %v1778
  %v1780 = vand.u32 %v1628, 4294901760
  %1781 = vmatmul.f32.gmra.mxu0 %v1780
  %v1782 = vpop.f32.mrf.mxu0
  %v1783 = vadd.f32 %v1674, %v1782
  %v1784 = vand.u32 %v1632, 4294901760
  %1785 = vmatmul.f32.gmra.mxu0 %v1784
  %v1786 = vpop.f32.mrf.mxu0
  %v1787 = vadd.f32 %v1682, %v1786
  %1788 = vdwg.mxu0
  %v1789 = vand.u32 %v36, 4294901760
  %v1790 = vsub.f32 %v36, %v1789
  %1791 = vmatpush.msra.mxu0 %v1790
  %v1792 = vand.u32 %v35, 4294901760
  %v1793 = vsub.f32 %v35, %v1792
  %1794 = vmatpush.msra.mxu0 %v1793
  %v1795 = vand.u32 %v34, 4294901760
  %v1796 = vsub.f32 %v34, %v1795
  %1797 = vmatpush.msra.mxu0 %v1796
  %v1798 = vand.u32 %v33, 4294901760
  %v1799 = vsub.f32 %v33, %v1798
  %1800 = vmatpush.msra.mxu0 %v1799
  %v1801 = vand.u32 %v32, 4294901760
  %v1802 = vsub.f32 %v32, %v1801
  %1803 = vmatpush.msra.mxu0 %v1802
  %v1804 = vand.u32 %v31, 4294901760
  %v1805 = vsub.f32 %v31, %v1804
  %1806 = vmatpush.msra.mxu0 %v1805
  %v1807 = vand.u32 %v30, 4294901760
  %v1808 = vsub.f32 %v30, %v1807
  %1809 = vmatpush.msra.mxu0 %v1808
  %v1810 = vand.u32 %v29, 4294901760
  %v1811 = vsub.f32 %v29, %v1810
  %1812 = vmatpush.msra.mxu0 %v1811
  %v1813 = vand.u32 %v28, 4294901760
  %v1814 = vsub.f32 %v28, %v1813
  %1815 = vmatpush.msra.mxu0 %v1814
  %v1816 = vand.u32 %v27, 4294901760
  %v1817 = vsub.f32 %v27, %v1816
  %1818 = vmatpush.msra.mxu0 %v1817
  %v1819 = vand.u32 %v26, 4294901760
  %v1820 = vsub.f32 %v26, %v1819
  %1821 = vmatpush.msra.mxu0 %v1820
  %v1822 = vand.u32 %v25, 4294901760
  %v1823 = vsub.f32 %v25, %v1822
  %1824 = vmatpush.msra.mxu0 %v1823
  %v1825 = vand.u32 %v24, 4294901760
  %v1826 = vsub.f32 %v24, %v1825
  %1827 = vmatpush.msra.mxu0 %v1826
  %v1828 = vand.u32 %v23, 4294901760
  %v1829 = vsub.f32 %v23, %v1828
  %1830 = vmatpush.msra.mxu0 %v1829
  %v1831 = vand.u32 %v22, 4294901760
  %v1832 = vsub.f32 %v22, %v1831
  %1833 = vmatpush.msra.mxu0 %v1832
  %v1834 = vand.u32 %v21, 4294901760
  %v1835 = vsub.f32 %v21, %v1834
  %1836 = vmatpush.msra.mxu0 %v1835
  %v1837 = vand.u32 %v1628, 4294901760
  %v1838 = vsub.f32 %v1628, %v1837
  %1839 = vmatmul.f32.gmra.mxu0 %v1838
  %v1840 = vpop.f32.mrf.mxu0
  %v1841 = vadd.f32 %v1783, %v1840
  %v1842 = vand.u32 %v1632, 4294901760
  %v1843 = vsub.f32 %v1632, %v1842
  %1844 = vmatmul.f32.gmra.mxu0 %v1843
  %v1845 = vpop.f32.mrf.mxu0
  %v1846 = vadd.f32 %v1787, %v1845
  %1847 = vdwg.mxu0
  %v1848 = vand.u32 %v36, 4294901760
  %1849 = vmatpush.msra.mxu0 %v1848
  %v1850 = vand.u32 %v35, 4294901760
  %1851 = vmatpush.msra.mxu0 %v1850
  %v1852 = vand.u32 %v34, 4294901760
  %1853 = vmatpush.msra.mxu0 %v1852
  %v1854 = vand.u32 %v33, 4294901760
  %1855 = vmatpush.msra.mxu0 %v1854
  %v1856 = vand.u32 %v32, 4294901760
  %1857 = vmatpush.msra.mxu0 %v1856
  %v1858 = vand.u32 %v31, 4294901760
  %1859 = vmatpush.msra.mxu0 %v1858
  %v1860 = vand.u32 %v30, 4294901760
  %1861 = vmatpush.msra.mxu0 %v1860
  %v1862 = vand.u32 %v29, 4294901760
  %1863 = vmatpush.msra.mxu0 %v1862
  %v1864 = vand.u32 %v28, 4294901760
  %1865 = vmatpush.msra.mxu0 %v1864
  %v1866 = vand.u32 %v27, 4294901760
  %1867 = vmatpush.msra.mxu0 %v1866
  %v1868 = vand.u32 %v26, 4294901760
  %1869 = vmatpush.msra.mxu0 %v1868
  %v1870 = vand.u32 %v25, 4294901760
  %1871 = vmatpush.msra.mxu0 %v1870
  %v1872 = vand.u32 %v24, 4294901760
  %1873 = vmatpush.msra.mxu0 %v1872
  %v1874 = vand.u32 %v23, 4294901760
  %1875 = vmatpush.msra.mxu0 %v1874
  %v1876 = vand.u32 %v22, 4294901760
  %1877 = vmatpush.msra.mxu0 %v1876
  %v1878 = vand.u32 %v21, 4294901760
  %1879 = vmatpush.msra.mxu0 %v1878
  %v1880 = vand.u32 %v1628, 4294901760
  %v1881 = vsub.f32 %v1628, %v1880
  %v1882 = vand.u32 %v1881, 4294901760
  %1883 = vmatmul.f32.gmra.mxu0 %v1882
  %v1884 = vpop.f32.mrf.mxu0
  %v1885 = vadd.f32 %v1841, %v1884
  %v1886 = vand.u32 %v1632, 4294901760
  %v1887 = vsub.f32 %v1632, %v1886
  %v1888 = vand.u32 %v1887, 4294901760
  %1889 = vmatmul.f32.gmra.mxu0 %v1888
  %v1890 = vpop.f32.mrf.mxu0
  %v1891 = vadd.f32 %v1846, %v1890
  %1892 = vdwg.mxu0
  %v1893 = vand.u32 %v36, 4294901760
  %v1894 = vsub.f32 %v36, %v1893
  %v1895 = vand.u32 %v1894, 4294901760
  %1896 = vmatpush.msra.mxu0 %v1895
  %v1897 = vand.u32 %v35, 4294901760
  %v1898 = vsub.f32 %v35, %v1897
  %v1899 = vand.u32 %v1898, 4294901760
  %1900 = vmatpush.msra.mxu0 %v1899
  %v1901 = vand.u32 %v34, 4294901760
  %v1902 = vsub.f32 %v34, %v1901
  %v1903 = vand.u32 %v1902, 4294901760
  %1904 = vmatpush.msra.mxu0 %v1903
  %v1905 = vand.u32 %v33, 4294901760
  %v1906 = vsub.f32 %v33, %v1905
  %v1907 = vand.u32 %v1906, 4294901760
  %1908 = vmatpush.msra.mxu0 %v1907
  %v1909 = vand.u32 %v32, 4294901760
  %v1910 = vsub.f32 %v32, %v1909
  %v1911 = vand.u32 %v1910, 4294901760
  %1912 = vmatpush.msra.mxu0 %v1911
  %v1913 = vand.u32 %v31, 4294901760
  %v1914 = vsub.f32 %v31, %v1913
  %v1915 = vand.u32 %v1914, 4294901760
  %1916 = vmatpush.msra.mxu0 %v1915
  %v1917 = vand.u32 %v30, 4294901760
  %v1918 = vsub.f32 %v30, %v1917
  %v1919 = vand.u32 %v1918, 4294901760
  %1920 = vmatpush.msra.mxu0 %v1919
  %v1921 = vand.u32 %v29, 4294901760
  %v1922 = vsub.f32 %v29, %v1921
  %v1923 = vand.u32 %v1922, 4294901760
  %1924 = vmatpush.msra.mxu0 %v1923
  %v1925 = vand.u32 %v28, 4294901760
  %v1926 = vsub.f32 %v28, %v1925
  %v1927 = vand.u32 %v1926, 4294901760
  %1928 = vmatpush.msra.mxu0 %v1927
  %v1929 = vand.u32 %v27, 4294901760
  %v1930 = vsub.f32 %v27, %v1929
  %v1931 = vand.u32 %v1930, 4294901760
  %1932 = vmatpush.msra.mxu0 %v1931
  %v1933 = vand.u32 %v26, 4294901760
  %v1934 = vsub.f32 %v26, %v1933
  %v1935 = vand.u32 %v1934, 4294901760
  %1936 = vmatpush.msra.mxu0 %v1935
  %v1937 = vand.u32 %v25, 4294901760
  %v1938 = vsub.f32 %v25, %v1937
  %v1939 = vand.u32 %v1938, 4294901760
  %1940 = vmatpush.msra.mxu0 %v1939
  %v1941 = vand.u32 %v24, 4294901760
  %v1942 = vsub.f32 %v24, %v1941
  %v1943 = vand.u32 %v1942, 4294901760
  %1944 = vmatpush.msra.mxu0 %v1943
  %v1945 = vand.u32 %v23, 4294901760
  %v1946 = vsub.f32 %v23, %v1945
  %v1947 = vand.u32 %v1946, 4294901760
  %1948 = vmatpush.msra.mxu0 %v1947
  %v1949 = vand.u32 %v22, 4294901760
  %v1950 = vsub.f32 %v22, %v1949
  %v1951 = vand.u32 %v1950, 4294901760
  %1952 = vmatpush.msra.mxu0 %v1951
  %v1953 = vand.u32 %v21, 4294901760
  %v1954 = vsub.f32 %v21, %v1953
  %v1955 = vand.u32 %v1954, 4294901760
  %1956 = vmatpush.msra.mxu0 %v1955
  %v1957 = vand.u32 %v1628, 4294901760
  %1958 = vmatmul.f32.gmra.mxu0 %v1957
  %v1959 = vpop.f32.mrf.mxu0
  %v1960 = vadd.f32 %v1885, %v1959
  %v1961 = vand.u32 %v1632, 4294901760
  %1962 = vmatmul.f32.gmra.mxu0 %v1961
  %v1963 = vpop.f32.mrf.mxu0
  %v1964 = vadd.f32 %v1891, %v1963
  %1965 = vdwg.mxu0
  %v1966 = vand.u32 %v36, 4294901760
  %1967 = vmatpush.msra.mxu0 %v1966
  %v1968 = vand.u32 %v35, 4294901760
  %1969 = vmatpush.msra.mxu0 %v1968
  %v1970 = vand.u32 %v34, 4294901760
  %1971 = vmatpush.msra.mxu0 %v1970
  %v1972 = vand.u32 %v33, 4294901760
  %1973 = vmatpush.msra.mxu0 %v1972
  %v1974 = vand.u32 %v32, 4294901760
  %1975 = vmatpush.msra.mxu0 %v1974
  %v1976 = vand.u32 %v31, 4294901760
  %1977 = vmatpush.msra.mxu0 %v1976
  %v1978 = vand.u32 %v30, 4294901760
  %1979 = vmatpush.msra.mxu0 %v1978
  %v1980 = vand.u32 %v29, 4294901760
  %1981 = vmatpush.msra.mxu0 %v1980
  %v1982 = vand.u32 %v28, 4294901760
  %1983 = vmatpush.msra.mxu0 %v1982
  %v1984 = vand.u32 %v27, 4294901760
  %1985 = vmatpush.msra.mxu0 %v1984
  %v1986 = vand.u32 %v26, 4294901760
  %1987 = vmatpush.msra.mxu0 %v1986
  %v1988 = vand.u32 %v25, 4294901760
  %1989 = vmatpush.msra.mxu0 %v1988
  %v1990 = vand.u32 %v24, 4294901760
  %1991 = vmatpush.msra.mxu0 %v1990
  %v1992 = vand.u32 %v23, 4294901760
  %1993 = vmatpush.msra.mxu0 %v1992
  %v1994 = vand.u32 %v22, 4294901760
  %1995 = vmatpush.msra.mxu0 %v1994
  %v1996 = vand.u32 %v21, 4294901760
  %1997 = vmatpush.msra.mxu0 %v1996
  %v1998 = vand.u32 %v1628, 4294901760
  %1999 = vmatmul.f32.gmra.mxu0 %v1998
  %v2000 = vpop.f32.mrf.mxu0
  %v2001 = vadd.f32 %v1960, %v2000
  %v2002 = vand.u32 %v1632, 4294901760
  %2003 = vmatmul.f32.gmra.mxu0 %v2002
  %v2004 = vpop.f32.mrf.mxu0
  %v2005 = vadd.f32 %v1964, %v2004
  %2006 = vdwg.mxu0
  %v2007 = vand.u32 %v52, 4294901760
  %2008 = vmatpush.msra.mxu0 %v2007
  %v2009 = vand.u32 %v51, 4294901760
  %2010 = vmatpush.msra.mxu0 %v2009
  %v2011 = vand.u32 %v50, 4294901760
  %2012 = vmatpush.msra.mxu0 %v2011
  %v2013 = vand.u32 %v49, 4294901760
  %2014 = vmatpush.msra.mxu0 %v2013
  %v2015 = vand.u32 %v48, 4294901760
  %2016 = vmatpush.msra.mxu0 %v2015
  %v2017 = vand.u32 %v47, 4294901760
  %2018 = vmatpush.msra.mxu0 %v2017
  %v2019 = vand.u32 %v46, 4294901760
  %2020 = vmatpush.msra.mxu0 %v2019
  %v2021 = vand.u32 %v45, 4294901760
  %2022 = vmatpush.msra.mxu0 %v2021
  %v2023 = vand.u32 %v44, 4294901760
  %2024 = vmatpush.msra.mxu0 %v2023
  %v2025 = vand.u32 %v43, 4294901760
  %2026 = vmatpush.msra.mxu0 %v2025
  %v2027 = vand.u32 %v42, 4294901760
  %2028 = vmatpush.msra.mxu0 %v2027
  %v2029 = vand.u32 %v41, 4294901760
  %2030 = vmatpush.msra.mxu0 %v2029
  %v2031 = vand.u32 %v40, 4294901760
  %2032 = vmatpush.msra.mxu0 %v2031
  %v2033 = vand.u32 %v39, 4294901760
  %2034 = vmatpush.msra.mxu0 %v2033
  %v2035 = vand.u32 %v38, 4294901760
  %2036 = vmatpush.msra.mxu0 %v2035
  %v2037 = vand.u32 %v37, 4294901760
  %2038 = vmatpush.msra.mxu0 %v2037
  %v2039 = vand.u32 %v1630, 4294901760
  %v2040 = vsub.f32 %v1630, %v2039
  %v2041 = vand.u32 %v2040, 4294901760
  %v2042 = vsub.f32 %v2040, %v2041
  %v2043 = vand.u32 %v2042, 4294901760
  %2044 = vmatmul.f32.gmra.mxu0 %v2043
  %v2045 = vpop.f32.mrf.mxu0
  %v2046 = vadd.f32 %v2001, %v2045
  %v2047 = vand.u32 %v1634, 4294901760
  %v2048 = vsub.f32 %v1634, %v2047
  %v2049 = vand.u32 %v2048, 4294901760
  %v2050 = vsub.f32 %v2048, %v2049
  %v2051 = vand.u32 %v2050, 4294901760
  %2052 = vmatmul.f32.gmra.mxu0 %v2051
  %v2053 = vpop.f32.mrf.mxu0
  %v2054 = vadd.f32 %v2005, %v2053
  %2055 = vdwg.mxu0
  %v2056 = vand.u32 %v52, 4294901760
  %v2057 = vsub.f32 %v52, %v2056
  %v2058 = vand.u32 %v2057, 4294901760
  %v2059 = vsub.f32 %v2057, %v2058
  %v2060 = vand.u32 %v2059, 4294901760
  %2061 = vmatpush.msra.mxu0 %v2060
  %v2062 = vand.u32 %v51, 4294901760
  %v2063 = vsub.f32 %v51, %v2062
  %v2064 = vand.u32 %v2063, 4294901760
  %v2065 = vsub.f32 %v2063, %v2064
  %v2066 = vand.u32 %v2065, 4294901760
  %2067 = vmatpush.msra.mxu0 %v2066
  %v2068 = vand.u32 %v50, 4294901760
  %v2069 = vsub.f32 %v50, %v2068
  %v2070 = vand.u32 %v2069, 4294901760
  %v2071 = vsub.f32 %v2069, %v2070
  %v2072 = vand.u32 %v2071, 4294901760
  %2073 = vmatpush.msra.mxu0 %v2072
  %v2074 = vand.u32 %v49, 4294901760
  %v2075 = vsub.f32 %v49, %v2074
  %v2076 = vand.u32 %v2075, 4294901760
  %v2077 = vsub.f32 %v2075, %v2076
  %v2078 = vand.u32 %v2077, 4294901760
  %2079 = vmatpush.msra.mxu0 %v2078
  %v2080 = vand.u32 %v48, 4294901760
  %v2081 = vsub.f32 %v48, %v2080
  %v2082 = vand.u32 %v2081, 4294901760
  %v2083 = vsub.f32 %v2081, %v2082
  %v2084 = vand.u32 %v2083, 4294901760
  %2085 = vmatpush.msra.mxu0 %v2084
  %v2086 = vand.u32 %v47, 4294901760
  %v2087 = vsub.f32 %v47, %v2086
  %v2088 = vand.u32 %v2087, 4294901760
  %v2089 = vsub.f32 %v2087, %v2088
  %v2090 = vand.u32 %v2089, 4294901760
  %2091 = vmatpush.msra.mxu0 %v2090
  %v2092 = vand.u32 %v46, 4294901760
  %v2093 = vsub.f32 %v46, %v2092
  %v2094 = vand.u32 %v2093, 4294901760
  %v2095 = vsub.f32 %v2093, %v2094
  %v2096 = vand.u32 %v2095, 4294901760
  %2097 = vmatpush.msra.mxu0 %v2096
  %v2098 = vand.u32 %v45, 4294901760
  %v2099 = vsub.f32 %v45, %v2098
  %v2100 = vand.u32 %v2099, 4294901760
  %v2101 = vsub.f32 %v2099, %v2100
  %v2102 = vand.u32 %v2101, 4294901760
  %2103 = vmatpush.msra.mxu0 %v2102
  %v2104 = vand.u32 %v44, 4294901760
  %v2105 = vsub.f32 %v44, %v2104
  %v2106 = vand.u32 %v2105, 4294901760
  %v2107 = vsub.f32 %v2105, %v2106
  %v2108 = vand.u32 %v2107, 4294901760
  %2109 = vmatpush.msra.mxu0 %v2108
  %v2110 = vand.u32 %v43, 4294901760
  %v2111 = vsub.f32 %v43, %v2110
  %v2112 = vand.u32 %v2111, 4294901760
  %v2113 = vsub.f32 %v2111, %v2112
  %v2114 = vand.u32 %v2113, 4294901760
  %2115 = vmatpush.msra.mxu0 %v2114
  %v2116 = vand.u32 %v42, 4294901760
  %v2117 = vsub.f32 %v42, %v2116
  %v2118 = vand.u32 %v2117, 4294901760
  %v2119 = vsub.f32 %v2117, %v2118
  %v2120 = vand.u32 %v2119, 4294901760
  %2121 = vmatpush.msra.mxu0 %v2120
  %v2122 = vand.u32 %v41, 4294901760
  %v2123 = vsub.f32 %v41, %v2122
  %v2124 = vand.u32 %v2123, 4294901760
  %v2125 = vsub.f32 %v2123, %v2124
  %v2126 = vand.u32 %v2125, 4294901760
  %2127 = vmatpush.msra.mxu0 %v2126
  %v2128 = vand.u32 %v40, 4294901760
  %v2129 = vsub.f32 %v40, %v2128
  %v2130 = vand.u32 %v2129, 4294901760
  %v2131 = vsub.f32 %v2129, %v2130
  %v2132 = vand.u32 %v2131, 4294901760
  %2133 = vmatpush.msra.mxu0 %v2132
  %v2134 = vand.u32 %v39, 4294901760
  %v2135 = vsub.f32 %v39, %v2134
  %v2136 = vand.u32 %v2135, 4294901760
  %v2137 = vsub.f32 %v2135, %v2136
  %v2138 = vand.u32 %v2137, 4294901760
  %2139 = vmatpush.msra.mxu0 %v2138
  %v2140 = vand.u32 %v38, 4294901760
  %v2141 = vsub.f32 %v38, %v2140
  %v2142 = vand.u32 %v2141, 4294901760
  %v2143 = vsub.f32 %v2141, %v2142
  %v2144 = vand.u32 %v2143, 4294901760
  %2145 = vmatpush.msra.mxu0 %v2144
  %v2146 = vand.u32 %v37, 4294901760
  %v2147 = vsub.f32 %v37, %v2146
  %v2148 = vand.u32 %v2147, 4294901760
  %v2149 = vsub.f32 %v2147, %v2148
  %v2150 = vand.u32 %v2149, 4294901760
  %2151 = vmatpush.msra.mxu0 %v2150
  %v2152 = vand.u32 %v1630, 4294901760
  %2153 = vmatmul.f32.gmra.mxu0 %v2152
  %v2154 = vpop.f32.mrf.mxu0
  %v2155 = vadd.f32 %v2046, %v2154
  %v2156 = vand.u32 %v1634, 4294901760
  %2157 = vmatmul.f32.gmra.mxu0 %v2156
  %v2158 = vpop.f32.mrf.mxu0
  %v2159 = vadd.f32 %v2054, %v2158
  %2160 = vdwg.mxu0
  %v2161 = vand.u32 %v52, 4294901760
  %v2162 = vsub.f32 %v52, %v2161
  %2163 = vmatpush.msra.mxu0 %v2162
  %v2164 = vand.u32 %v51, 4294901760
  %v2165 = vsub.f32 %v51, %v2164
  %2166 = vmatpush.msra.mxu0 %v2165
  %v2167 = vand.u32 %v50, 4294901760
  %v2168 = vsub.f32 %v50, %v2167
  %2169 = vmatpush.msra.mxu0 %v2168
  %v2170 = vand.u32 %v49, 4294901760
  %v2171 = vsub.f32 %v49, %v2170
  %2172 = vmatpush.msra.mxu0 %v2171
  %v2173 = vand.u32 %v48, 4294901760
  %v2174 = vsub.f32 %v48, %v2173
  %2175 = vmatpush.msra.mxu0 %v2174
  %v2176 = vand.u32 %v47, 4294901760
  %v2177 = vsub.f32 %v47, %v2176
  %2178 = vmatpush.msra.mxu0 %v2177
  %v2179 = vand.u32 %v46, 4294901760
  %v2180 = vsub.f32 %v46, %v2179
  %2181 = vmatpush.msra.mxu0 %v2180
  %v2182 = vand.u32 %v45, 4294901760
  %v2183 = vsub.f32 %v45, %v2182
  %2184 = vmatpush.msra.mxu0 %v2183
  %v2185 = vand.u32 %v44, 4294901760
  %v2186 = vsub.f32 %v44, %v2185
  %2187 = vmatpush.msra.mxu0 %v2186
  %v2188 = vand.u32 %v43, 4294901760
  %v2189 = vsub.f32 %v43, %v2188
  %2190 = vmatpush.msra.mxu0 %v2189
  %v2191 = vand.u32 %v42, 4294901760
  %v2192 = vsub.f32 %v42, %v2191
  %2193 = vmatpush.msra.mxu0 %v2192
  %v2194 = vand.u32 %v41, 4294901760
  %v2195 = vsub.f32 %v41, %v2194
  %2196 = vmatpush.msra.mxu0 %v2195
  %v2197 = vand.u32 %v40, 4294901760
  %v2198 = vsub.f32 %v40, %v2197
  %2199 = vmatpush.msra.mxu0 %v2198
  %v2200 = vand.u32 %v39, 4294901760
  %v2201 = vsub.f32 %v39, %v2200
  %2202 = vmatpush.msra.mxu0 %v2201
  %v2203 = vand.u32 %v38, 4294901760
  %v2204 = vsub.f32 %v38, %v2203
  %2205 = vmatpush.msra.mxu0 %v2204
  %v2206 = vand.u32 %v37, 4294901760
  %v2207 = vsub.f32 %v37, %v2206
  %2208 = vmatpush.msra.mxu0 %v2207
  %v2209 = vand.u32 %v1630, 4294901760
  %v2210 = vsub.f32 %v1630, %v2209
  %2211 = vmatmul.f32.gmra.mxu0 %v2210
  %v2212 = vpop.f32.mrf.mxu0
  %v2213 = vadd.f32 %v2155, %v2212
  %v2214 = vand.u32 %v1634, 4294901760
  %v2215 = vsub.f32 %v1634, %v2214
  %2216 = vmatmul.f32.gmra.mxu0 %v2215
  %v2217 = vpop.f32.mrf.mxu0
  %v2218 = vadd.f32 %v2159, %v2217
  %2219 = vdwg.mxu0
  %v2220 = vand.u32 %v52, 4294901760
  %2221 = vmatpush.msra.mxu0 %v2220
  %v2222 = vand.u32 %v51, 4294901760
  %2223 = vmatpush.msra.mxu0 %v2222
  %v2224 = vand.u32 %v50, 4294901760
  %2225 = vmatpush.msra.mxu0 %v2224
  %v2226 = vand.u32 %v49, 4294901760
  %2227 = vmatpush.msra.mxu0 %v2226
  %v2228 = vand.u32 %v48, 4294901760
  %2229 = vmatpush.msra.mxu0 %v2228
  %v2230 = vand.u32 %v47, 4294901760
  %2231 = vmatpush.msra.mxu0 %v2230
  %v2232 = vand.u32 %v46, 4294901760
  %2233 = vmatpush.msra.mxu0 %v2232
  %v2234 = vand.u32 %v45, 4294901760
  %2235 = vmatpush.msra.mxu0 %v2234
  %v2236 = vand.u32 %v44, 4294901760
  %2237 = vmatpush.msra.mxu0 %v2236
  %v2238 = vand.u32 %v43, 4294901760
  %2239 = vmatpush.msra.mxu0 %v2238
  %v2240 = vand.u32 %v42, 4294901760
  %2241 = vmatpush.msra.mxu0 %v2240
  %v2242 = vand.u32 %v41, 4294901760
  %2243 = vmatpush.msra.mxu0 %v2242
  %v2244 = vand.u32 %v40, 4294901760
  %2245 = vmatpush.msra.mxu0 %v2244
  %v2246 = vand.u32 %v39, 4294901760
  %2247 = vmatpush.msra.mxu0 %v2246
  %v2248 = vand.u32 %v38, 4294901760
  %2249 = vmatpush.msra.mxu0 %v2248
  %v2250 = vand.u32 %v37, 4294901760
  %2251 = vmatpush.msra.mxu0 %v2250
  %v2252 = vand.u32 %v1630, 4294901760
  %v2253 = vsub.f32 %v1630, %v2252
  %v2254 = vand.u32 %v2253, 4294901760
  %2255 = vmatmul.f32.gmra.mxu0 %v2254
  %v2256 = vpop.f32.mrf.mxu0
  %v2257 = vadd.f32 %v2213, %v2256
  %v2258 = vand.u32 %v1634, 4294901760
  %v2259 = vsub.f32 %v1634, %v2258
  %v2260 = vand.u32 %v2259, 4294901760
  %2261 = vmatmul.f32.gmra.mxu0 %v2260
  %v2262 = vpop.f32.mrf.mxu0
  %v2263 = vadd.f32 %v2218, %v2262
  %2264 = vdwg.mxu0
  %v2265 = vand.u32 %v52, 4294901760
  %v2266 = vsub.f32 %v52, %v2265
  %v2267 = vand.u32 %v2266, 4294901760
  %2268 = vmatpush.msra.mxu0 %v2267
  %v2269 = vand.u32 %v51, 4294901760
  %v2270 = vsub.f32 %v51, %v2269
  %v2271 = vand.u32 %v2270, 4294901760
  %2272 = vmatpush.msra.mxu0 %v2271
  %v2273 = vand.u32 %v50, 4294901760
  %v2274 = vsub.f32 %v50, %v2273
  %v2275 = vand.u32 %v2274, 4294901760
  %2276 = vmatpush.msra.mxu0 %v2275
  %v2277 = vand.u32 %v49, 4294901760
  %v2278 = vsub.f32 %v49, %v2277
  %v2279 = vand.u32 %v2278, 4294901760
  %2280 = vmatpush.msra.mxu0 %v2279
  %v2281 = vand.u32 %v48, 4294901760
  %v2282 = vsub.f32 %v48, %v2281
  %v2283 = vand.u32 %v2282, 4294901760
  %2284 = vmatpush.msra.mxu0 %v2283
  %v2285 = vand.u32 %v47, 4294901760
  %v2286 = vsub.f32 %v47, %v2285
  %v2287 = vand.u32 %v2286, 4294901760
  %2288 = vmatpush.msra.mxu0 %v2287
  %v2289 = vand.u32 %v46, 4294901760
  %v2290 = vsub.f32 %v46, %v2289
  %v2291 = vand.u32 %v2290, 4294901760
  %2292 = vmatpush.msra.mxu0 %v2291
  %v2293 = vand.u32 %v45, 4294901760
  %v2294 = vsub.f32 %v45, %v2293
  %v2295 = vand.u32 %v2294, 4294901760
  %2296 = vmatpush.msra.mxu0 %v2295
  %v2297 = vand.u32 %v44, 4294901760
  %v2298 = vsub.f32 %v44, %v2297
  %v2299 = vand.u32 %v2298, 4294901760
  %2300 = vmatpush.msra.mxu0 %v2299
  %v2301 = vand.u32 %v43, 4294901760
  %v2302 = vsub.f32 %v43, %v2301
  %v2303 = vand.u32 %v2302, 4294901760
  %2304 = vmatpush.msra.mxu0 %v2303
  %v2305 = vand.u32 %v42, 4294901760
  %v2306 = vsub.f32 %v42, %v2305
  %v2307 = vand.u32 %v2306, 4294901760
  %2308 = vmatpush.msra.mxu0 %v2307
  %v2309 = vand.u32 %v41, 4294901760
  %v2310 = vsub.f32 %v41, %v2309
  %v2311 = vand.u32 %v2310, 4294901760
  %2312 = vmatpush.msra.mxu0 %v2311
  %v2313 = vand.u32 %v40, 4294901760
  %v2314 = vsub.f32 %v40, %v2313
  %v2315 = vand.u32 %v2314, 4294901760
  %2316 = vmatpush.msra.mxu0 %v2315
  %v2317 = vand.u32 %v39, 4294901760
  %v2318 = vsub.f32 %v39, %v2317
  %v2319 = vand.u32 %v2318, 4294901760
  %2320 = vmatpush.msra.mxu0 %v2319
  %v2321 = vand.u32 %v38, 4294901760
  %v2322 = vsub.f32 %v38, %v2321
  %v2323 = vand.u32 %v2322, 4294901760
  %2324 = vmatpush.msra.mxu0 %v2323
  %v2325 = vand.u32 %v37, 4294901760
  %v2326 = vsub.f32 %v37, %v2325
  %v2327 = vand.u32 %v2326, 4294901760
  %2328 = vmatpush.msra.mxu0 %v2327
  %v2329 = vand.u32 %v1630, 4294901760
  %2330 = vmatmul.f32.gmra.mxu0 %v2329
  %v2331 = vpop.f32.mrf.mxu0
  %v2332 = vadd.f32 %v2257, %v2331
  %v2333 = vand.u32 %v1634, 4294901760
  %2334 = vmatmul.f32.gmra.mxu0 %v2333
  %v2335 = vpop.f32.mrf.mxu0
  %v2336 = vadd.f32 %v2263, %v2335
  %2337 = vdwg.mxu0
  %v2338 = vand.u32 %v52, 4294901760
  %2339 = vmatpush.msra.mxu0 %v2338
  %v2340 = vand.u32 %v51, 4294901760
  %2341 = vmatpush.msra.mxu0 %v2340
  %v2342 = vand.u32 %v50, 4294901760
  %2343 = vmatpush.msra.mxu0 %v2342
  %v2344 = vand.u32 %v49, 4294901760
  %2345 = vmatpush.msra.mxu0 %v2344
  %v2346 = vand.u32 %v48, 4294901760
  %2347 = vmatpush.msra.mxu0 %v2346
  %v2348 = vand.u32 %v47, 4294901760
  %2349 = vmatpush.msra.mxu0 %v2348
  %v2350 = vand.u32 %v46, 4294901760
  %2351 = vmatpush.msra.mxu0 %v2350
  %v2352 = vand.u32 %v45, 4294901760
  %2353 = vmatpush.msra.mxu0 %v2352
  %v2354 = vand.u32 %v44, 4294901760
  %2355 = vmatpush.msra.mxu0 %v2354
  %v2356 = vand.u32 %v43, 4294901760
  %2357 = vmatpush.msra.mxu0 %v2356
  %v2358 = vand.u32 %v42, 4294901760
  %2359 = vmatpush.msra.mxu0 %v2358
  %v2360 = vand.u32 %v41, 4294901760
  %2361 = vmatpush.msra.mxu0 %v2360
  %v2362 = vand.u32 %v40, 4294901760
  %2363 = vmatpush.msra.mxu0 %v2362
  %v2364 = vand.u32 %v39, 4294901760
  %2365 = vmatpush.msra.mxu0 %v2364
  %v2366 = vand.u32 %v38, 4294901760
  %2367 = vmatpush.msra.mxu0 %v2366
  %v2368 = vand.u32 %v37, 4294901760
  %2369 = vmatpush.msra.mxu0 %v2368
  %v2370 = vand.u32 %v1630, 4294901760
  %2371 = vmatmul.f32.gmra.mxu0 %v2370
  %v2372 = vpop.f32.mrf.mxu0
  %v2373 = vadd.f32 %v2332, %v2372
  %v2374 = vand.u32 %v1634, 4294901760
  %2375 = vmatmul.f32.gmra.mxu0 %v2374
  %v2376 = vpop.f32.mrf.mxu0
  %v2377 = vadd.f32 %v2336, %v2376
  %2378 = vdwg.mxu0
  %v2379 = vrcp.pop %v2373
  %v2380 = vmul.f32 %v2373, %v2379
  %v2381 = vsub.f32 1.0, %v2380
  %v2382 = vmul.f32 %v2379, %v2381
  %v2383 = vadd.f32 %v2379, %v2382
  %vm2384 = vweird.f32 %v2373
  %vm2385 = vweird.f32 %v2379
  %vm2386 = vmor %vm2384, %vm2385
  %v2387 = vsel %vm2386, %v2379, %v2383
  %v2388 = vand.u32 2147483647, %v2373
  %vm2389 = vcmp.eq.f32.partialorder %v2388, 8.507059e+37
  %v2390 = vand.u32 %v2373, 2147483648
  %v2391 = vor.u32 1.1754944e-38, %v2390
  %v2392 = vsel %vm2389, %v2391, %v2387
  %v2393 = vrcp.pop %v2377
  %v2394 = vmul.f32 %v2377, %v2393
  %v2395 = vsub.f32 1.0, %v2394
  %v2396 = vmul.f32 %v2393, %v2395
  %v2397 = vadd.f32 %v2393, %v2396
  %vm2398 = vweird.f32 %v2377
  %vm2399 = vweird.f32 %v2393
  %vm2400 = vmor %vm2398, %vm2399
  %v2401 = vsel %vm2400, %v2393, %v2397
  %v2402 = vand.u32 2147483647, %v2377
  %vm2403 = vcmp.eq.f32.partialorder %v2402, 8.507059e+37
  %v2404 = vand.u32 %v2377, 2147483648
  %v2405 = vor.u32 1.1754944e-38, %v2404
  %v2406 = vsel %vm2403, %v2405, %v2401
  %2408 = vset.pattern.permute.xlu0 0
  %2409 = vperm.xlu0 %2408, %v2392
  %v2410 = vpop.permute.xlu0 %2409
  %2413 = vset.pattern.permute.xlu0 0
  %2414 = vperm.xlu0 %2413, %v2406
  %v2415 = vpop.permute.xlu0 %2414
  %v2417 = vmul.f32 %v2373, %v2410
  %v2418 = vmul.f32 %v2377, %v2415
  %2421 = vrot.lane.b32.xlu0 %v2417, 127
  %v2422 = vpop.permute.xlu0 %2421
  %2423 = vrot.lane.b32.xlu0 %v2418, 127
  %v2424 = vpop.permute.xlu0 %2423
  %s2427 = scalar_lea.vmem %s4, 16
  %2428 = vst.msk [vmem:[%s2427] sm:$0xff] %vm1247, %v2422
  %2429 = vst.msk [vmem:[%s2427 + $0x8] sm:$0x3] %vm1249, %v2424
  // Predicated region
  $region18: #{tpu_custom_call.1} parent=0 // pred_check
    _
  $region19: #{tpu_custom_call.1} parent=0 // pred_check_branch
    %2431 = sbr.rel (0) target = $region21
  $region20: #{tpu_custom_call.1} parent=0 // pred_region
    _
  $region21: #{tpu_custom_call.1} parent=0 // pred_fallthru
    _
  // Predicated region
  $region22: #{tpu_custom_call.1} parent=0 // pred_check
    _
  $region23: #{tpu_custom_call.1} parent=0 // pred_check_branch
    %2433 = sbr.rel (0) target = $region25
  $region24: #{tpu_custom_call.1} parent=0 // pred_region
    _
  $region25: #{tpu_custom_call.1} parent=0 // pred_fallthru
    _

</llo_original>
